<compile_context>
chip_gen: v7x
topology: tpu7x:2x2x1
jax: 0.10.0
libtpu: 0.0.40
codegen_flags: <defaults>
</compile_context>

<pallas_src>
import math
import jax
import jax.numpy as jnp
from jax import lax
from jax.experimental import pallas as pl
from jax.experimental.pallas import tpu as pltpu

# ---- problem sizes (small, consistent with the module) ----
B, L, D = 2, 8, 32      # batch, max_len, d_model
H = 4                   # n_heads
DK = D // H             # d_k per head
DFF = 64                # feed-forward hidden dim
EPS = 1e-6


def _layernorm(x, a, b):
    # torch: mean(-1), std(-1) (unbiased, divides by N-1), a*(x-mean)/(std+eps)+b
    mean = jnp.mean(x, axis=-1, keepdims=True)
    diff = x - mean
    var = jnp.sum(diff * diff, axis=-1, keepdims=True) * (1.0 / (x.shape[-1] - 1))
    inv = pl.reciprocal(jnp.sqrt(var) + EPS, approx=False)   # keep LN reciprocal exact
    return a * diff * inv + b


def _fast_recip(d):
    # EUP vrcp (off the VPU divide path) + one Newton-Raphson step for accuracy margin.
    r = pl.reciprocal(d, approx=True)
    return r * (2.0 - d * r)


def encoder_layer_kernel(x_ref, mask_ref, wqkv_ref, bqkv_ref, wo_ref,
                         w1_ref, b1_ref, w2_ref, vecs_ref, o_ref, attn_ref):
    x = x_ref[...]                    # (B*L, D)
    vecs = vecs_ref[...]              # (6, D): rows = [bo, ln1a, ln1b, ln2a, ln2b, b2]
    bo   = vecs[0:1]
    ln1a = vecs[1:2]
    ln1b = vecs[2:3]
    ln2a = vecs[3:4]
    ln2b = vecs[4:5]
    b2   = vecs[5:6]

    # ---------- sublayer 0: pre-norm -> multi-head self-attention -> residual ----------
    xn = _layernorm(x, ln1a, ln1b)

    # fused QKV projection: one lane-dense (B*L, D) @ (D, 3D) MXU push.
    # 1/sqrt(d_k) is already folded into the Q columns / bias by the wrapper.
    qkv = jnp.dot(xn, wqkv_ref[...], preferred_element_type=jnp.float32) + bqkv_ref[...]

    # additive key-mask bias: ONE compare/select for the whole (B, L) mask
    bias_all = jnp.where(mask_ref[...] == 0, jnp.float32(-1e9), jnp.float32(0.0))   # (B, L)

    wo = wo_ref[...]                  # (D, D)
    # contract last dims of both operands: q @ k^T with no materialized transpose
    qk_dims = (((1,), (1,)), ((), ()))

    for b in range(B):                # B=2, unrolled at trace time
        r0 = b * L
        bias = bias_all[b:b + 1, :]   # (1, L) key bias, broadcast over query rows
        acc = None                    # (L, D) per-batch attention output accumulator
        for h in range(H):            # H=4, unrolled; (L,L) scores are inherently per-head
            c0 = h * DK
            qh = qkv[r0:r0 + L, c0:c0 + DK]                 # (L, DK)
            kh = qkv[r0:r0 + L, D + c0:D + c0 + DK]         # (L, DK)
            vh = qkv[r0:r0 + L, 2 * D + c0:2 * D + c0 + DK] # (L, DK)
            s = lax.dot_general(qh, kh, qk_dims,
                                preferred_element_type=jnp.float32) + bias          # (L, L)
            m = jnp.max(s, axis=-1, keepdims=True)
            e = jnp.exp(s - m)
            p = e * _fast_recip(jnp.sum(e, axis=-1, keepdims=True))
            ctx_h = jnp.dot(p, vh, preferred_element_type=jnp.float32)              # (L, DK)
            # fold the output projection in per head: no lane-axis concat of head tiles
            contrib = jnp.dot(ctx_h, wo[c0:c0 + DK, :],
                              preferred_element_type=jnp.float32)                   # (L, D)
            acc = contrib if acc is None else acc + contrib
        # static sublane-offset write into the VMEM slab (no batch concat)
        attn_ref[r0:r0 + L, :] = acc

    x1 = x + attn_ref[...] + bo

    # ---------- sublayer 1: pre-norm -> feed forward -> residual ----------
    xn2 = _layernorm(x1, ln2a, ln2b)
    h1 = jnp.maximum(jnp.dot(xn2, w1_ref[...], preferred_element_type=jnp.float32) + b1_ref[...], 0.0)
    ff = jnp.dot(h1, w2_ref[...], preferred_element_type=jnp.float32) + b2
    o_ref[...] = x1 + ff


def encoder_layer_pallas(x, mask, params):
    """x: (B, L, D) float32; mask: (B, L) {0,1} int; params: dict of weights."""
    x2d = x.reshape(B * L, D)                                # free row-major flatten
    mask_i = mask.astype(jnp.int32)                          # (B, L)

    # pack operands: 9 inputs; fold 1/sqrt(d_k) into the Q projection (weight prep)
    scale = 1.0 / math.sqrt(DK)
    wqkv = jnp.concatenate([params["Wq"] * scale, params["Wk"], params["Wv"]], axis=1)      # (D, 3D)
    bqkv = jnp.concatenate([params["bq"] * scale, params["bk"], params["bv"]]).reshape(1, 3 * D)
    vecs = jnp.stack([params["bo"], params["ln1a"], params["ln1b"],
                      params["ln2a"], params["ln2b"], params["b2"]], axis=0)                 # (6, D)
    b1 = params["b1"].reshape(1, DFF)

    vmem = pl.BlockSpec(memory_space=pltpu.MemorySpace.VMEM)
    out2d = pl.pallas_call(
        encoder_layer_kernel,
        out_shape=jax.ShapeDtypeStruct((B * L, D), jnp.float32),
        in_specs=[vmem] * 9,
        out_specs=vmem,
        scratch_shapes=[pltpu.VMEM((B * L, D), jnp.float32)],   # attention-output slab
    )(x2d, mask_i, wqkv, bqkv, params["Wo"], params["W1"], b1, params["W2"], vecs)
    return out2d.reshape(B, L, D)


# ------------------------- pure-JAX reference (mirrors the PyTorch forward) -------------------------
def encoder_layer_ref(x, mask, p):
    def ln(x, a, b):
        mean = jnp.mean(x, axis=-1, keepdims=True)
        diff = x - mean
        std = jnp.sqrt(jnp.sum(diff * diff, axis=-1, keepdims=True) / (x.shape[-1] - 1))
        return a * diff / (std + EPS) + b

    # sublayer 0: self-attention
    xn = ln(x, p["ln1a"], p["ln1b"])
    q = (xn @ p["Wq"] + p["bq"]).reshape(B, L, H, DK).transpose(0, 2, 1, 3)
    k = (xn @ p["Wk"] + p["bk"]).reshape(B, L, H, DK).transpose(0, 2, 1, 3)
    v = (xn @ p["Wv"] + p["bv"]).reshape(B, L, H, DK).transpose(0, 2, 1, 3)
    scores = jnp.einsum("bhqd,bhkd->bhqk", q, k) / math.sqrt(DK)
    m4 = mask[:, None, None, :]
    scores = jnp.where(m4 == 0, -1e9, scores)
    p_attn = jax.nn.softmax(scores, axis=-1)
    a = jnp.einsum("bhqk,bhkd->bhqd", p_attn, v).transpose(0, 2, 1, 3).reshape(B, L, D)
    x1 = x + (a @ p["Wo"] + p["bo"])

    # sublayer 1: feed forward
    xn2 = ln(x1, p["ln2a"], p["ln2b"])
    ff = jnp.maximum(xn2 @ p["W1"] + p["b1"], 0.0) @ p["W2"] + p["b2"]
    return x1 + ff


if __name__ == "__main__":
    key = jax.random.PRNGKey(0)
    keys = jax.random.split(key, 16)

    params = {
        "Wq": jax.random.normal(keys[0], (D, D), jnp.float32) * 0.1,
        "bq": jax.random.normal(keys[1], (D,), jnp.float32) * 0.1,
        "Wk": jax.random.normal(keys[2], (D, D), jnp.float32) * 0.1,
        "bk": jax.random.normal(keys[3], (D,), jnp.float32) * 0.1,
        "Wv": jax.random.normal(keys[4], (D, D), jnp.float32) * 0.1,
        "bv": jax.random.normal(keys[5], (D,), jnp.float32) * 0.1,
        "Wo": jax.random.normal(keys[6], (D, D), jnp.float32) * 0.1,
        "bo": jax.random.normal(keys[7], (D,), jnp.float32) * 0.1,
        "ln1a": jnp.ones((D,), jnp.float32),
        "ln1b": jnp.zeros((D,), jnp.float32),
        "W1": jax.random.normal(keys[8], (D, DFF), jnp.float32) * 0.1,
        "b1": jax.random.normal(keys[9], (DFF,), jnp.float32) * 0.1,
        "W2": jax.random.normal(keys[10], (DFF, D), jnp.float32) * 0.1,
        "b2": jax.random.normal(keys[11], (D,), jnp.float32) * 0.1,
        "ln2a": jnp.ones((D,), jnp.float32),
        "ln2b": jnp.zeros((D,), jnp.float32),
    }

    x = jax.random.normal(keys[12], (B, L, D), jnp.float32)
    # padding mask: batch 1 has its last 2 positions masked out
    mask = jnp.ones((B, L), jnp.int32).at[1, -2:].set(0)

    out = encoder_layer_pallas(x, mask, params)
    jax.block_until_ready(out)

    ref = encoder_layer_ref(x, mask, params)
    assert out.shape == (B, L, D)
    assert jnp.allclose(out, ref, atol=1e-4, rtol=1e-4), "mismatch vs pure-JAX reference"

    print("KERNEL_OK")
</pallas_src>

<mosaic_0001>
module attributes {stable_mosaic.version = 11 : i64} {
  func.func @encoder_layer_kernel(%arg0: memref<16x32xf32, #tpu.memory_space<vmem>>, %arg1: memref<2x8xi32, #tpu.memory_space<vmem>>, %arg2: memref<32x96xf32, #tpu.memory_space<vmem>>, %arg3: memref<1x96xf32, #tpu.memory_space<vmem>>, %arg4: memref<32x32xf32, #tpu.memory_space<vmem>>, %arg5: memref<32x64xf32, #tpu.memory_space<vmem>>, %arg6: memref<1x64xf32, #tpu.memory_space<vmem>>, %arg7: memref<64x32xf32, #tpu.memory_space<vmem>>, %arg8: memref<6x32xf32, #tpu.memory_space<vmem>>, %arg9: memref<16x32xf32, #tpu.memory_space<vmem>>, %arg10: memref<16x32xf32, #tpu.memory_space<vmem>>) attributes {dimension_semantics = [], scalar_prefetch = 0 : i64, scratch_operands = 1 : i64, tpu.core_type = #tpu.core_type<tc>} {
    %c0 = arith.constant 0 : index
    %c0_0 = arith.constant 0 : index
    %0 = vector.load %arg0[%c0, %c0_0] : memref<16x32xf32, #tpu.memory_space<vmem>>, vector<16x32xf32>
    %c0_1 = arith.constant 0 : index
    %c0_2 = arith.constant 0 : index
    %1 = vector.load %arg8[%c0_1, %c0_2] : memref<6x32xf32, #tpu.memory_space<vmem>>, vector<6x32xf32>
    %2 = vector.extract_strided_slice %1 {offsets = [0, 0], sizes = [1, 32], strides = [1, 1]} : vector<6x32xf32> to vector<1x32xf32>
    %3 = vector.extract_strided_slice %1 {offsets = [1, 0], sizes = [1, 32], strides = [1, 1]} : vector<6x32xf32> to vector<1x32xf32>
    %4 = vector.extract_strided_slice %1 {offsets = [2, 0], sizes = [1, 32], strides = [1, 1]} : vector<6x32xf32> to vector<1x32xf32>
    %5 = vector.extract_strided_slice %1 {offsets = [3, 0], sizes = [1, 32], strides = [1, 1]} : vector<6x32xf32> to vector<1x32xf32>
    %6 = vector.extract_strided_slice %1 {offsets = [4, 0], sizes = [1, 32], strides = [1, 1]} : vector<6x32xf32> to vector<1x32xf32>
    %7 = vector.extract_strided_slice %1 {offsets = [5, 0], sizes = [1, 32], strides = [1, 1]} : vector<6x32xf32> to vector<1x32xf32>
    %cst = arith.constant dense<0.000000e+00> : vector<16xf32>
    %8 = vector.multi_reduction <add>, %0, %cst [1] : vector<16x32xf32> to vector<16xf32>
    %9 = vector.shape_cast %8 : vector<16xf32> to vector<16x1xf32>
    %cst_3 = arith.constant 3.200000e+01 : f32
    %10 = vector.broadcast %cst_3 : f32 to vector<16x1xf32>
    %11 = arith.divf %9, %10 : vector<16x1xf32>
    %12 = vector.broadcast %11 : vector<16x1xf32> to vector<16x32xf32>
    %13 = arith.subf %0, %12 : vector<16x32xf32>
    %14 = arith.mulf %13, %13 : vector<16x32xf32>
    %cst_4 = arith.constant dense<0.000000e+00> : vector<16xf32>
    %15 = vector.multi_reduction <add>, %14, %cst_4 [1] : vector<16x32xf32> to vector<16xf32>
    %16 = vector.shape_cast %15 : vector<16xf32> to vector<16x1xf32>
    %cst_5 = arith.constant 0.0322580636 : f32
    %17 = vector.broadcast %cst_5 : f32 to vector<16x1xf32>
    %18 = arith.mulf %16, %17 : vector<16x1xf32>
    %19 = math.sqrt %18 : vector<16x1xf32>
    %cst_6 = arith.constant 9.99999997E-7 : f32
    %20 = vector.broadcast %cst_6 : f32 to vector<16x1xf32>
    %21 = arith.addf %19, %20 : vector<16x1xf32>
    %22 = tpu.reciprocal %21 : vector<16x1xf32> -> vector<16x1xf32>
    %23 = vector.broadcast %3 : vector<1x32xf32> to vector<16x32xf32>
    %24 = arith.mulf %23, %13 : vector<16x32xf32>
    %25 = vector.broadcast %22 : vector<16x1xf32> to vector<16x32xf32>
    %26 = arith.mulf %24, %25 : vector<16x32xf32>
    %27 = vector.broadcast %4 : vector<1x32xf32> to vector<16x32xf32>
    %28 = arith.addf %26, %27 : vector<16x32xf32>
    %c0_7 = arith.constant 0 : index
    %c0_8 = arith.constant 0 : index
    %29 = vector.load %arg2[%c0_7, %c0_8] : memref<32x96xf32, #tpu.memory_space<vmem>>, vector<32x96xf32>
    %cst_9 = arith.constant dense<0.000000e+00> : vector<16x96xf32>
    %30 = tpu.matmul %28, %29, %cst_9 {dimension_numbers = #tpu.dot_dimension_numbers<[1], [0], [0], [1], [0, 0, 1, 1], [], []>} : vector<16x32xf32>, vector<32x96xf32>, vector<16x96xf32> -> vector<16x96xf32>
    %c0_10 = arith.constant 0 : index
    %c0_11 = arith.constant 0 : index
    %31 = vector.load %arg3[%c0_10, %c0_11] : memref<1x96xf32, #tpu.memory_space<vmem>>, vector<1x96xf32>
    %32 = vector.broadcast %31 : vector<1x96xf32> to vector<16x96xf32>
    %33 = arith.addf %30, %32 : vector<16x96xf32>
    %c0_12 = arith.constant 0 : index
    %c0_13 = arith.constant 0 : index
    %34 = vector.load %arg1[%c0_12, %c0_13] : memref<2x8xi32, #tpu.memory_space<vmem>>, vector<2x8xi32>
    %c0_i32 = arith.constant 0 : i32
    %35 = vector.broadcast %c0_i32 : i32 to vector<2x8xi32>
    %36 = arith.cmpi eq, %34, %35 : vector<2x8xi32>
    %cst_14 = arith.constant -1.000000e+09 : f32
    %cst_15 = arith.constant 0.000000e+00 : f32
    %37 = vector.broadcast %cst_14 : f32 to vector<2x8xf32>
    %38 = vector.broadcast %cst_15 : f32 to vector<2x8xf32>
    %39 = arith.select %36, %37, %38 : vector<2x8xi1>, vector<2x8xf32>
    %c0_16 = arith.constant 0 : index
    %c0_17 = arith.constant 0 : index
    %40 = vector.load %arg4[%c0_16, %c0_17] : memref<32x32xf32, #tpu.memory_space<vmem>>, vector<32x32xf32>
    %41 = vector.extract_strided_slice %39 {offsets = [0, 0], sizes = [1, 8], strides = [1, 1]} : vector<2x8xf32> to vector<1x8xf32>
    %42 = vector.extract_strided_slice %33 {offsets = [0, 0], sizes = [8, 8], strides = [1, 1]} : vector<16x96xf32> to vector<8x8xf32>
    %43 = vector.extract_strided_slice %33 {offsets = [0, 32], sizes = [8, 8], strides = [1, 1]} : vector<16x96xf32> to vector<8x8xf32>
    %44 = vector.extract_strided_slice %33 {offsets = [0, 64], sizes = [8, 8], strides = [1, 1]} : vector<16x96xf32> to vector<8x8xf32>
    %cst_18 = arith.constant dense<0.000000e+00> : vector<8x8xf32>
    %45 = tpu.matmul %42, %43, %cst_18 {dimension_numbers = #tpu.dot_dimension_numbers<[1], [1], [0], [0], [0, 0, 1, 0], [], []>} : vector<8x8xf32>, vector<8x8xf32>, vector<8x8xf32> -> vector<8x8xf32>
    %46 = vector.broadcast %41 : vector<1x8xf32> to vector<8x8xf32>
    %47 = arith.addf %45, %46 : vector<8x8xf32>
    %cst_19 = arith.constant dense<0xFF800000> : vector<8xf32>
    %48 = vector.multi_reduction <maximumf>, %47, %cst_19 [1] : vector<8x8xf32> to vector<8xf32>
    %49 = vector.shape_cast %48 : vector<8xf32> to vector<8x1xf32>
    %50 = vector.broadcast %49 : vector<8x1xf32> to vector<8x8xf32>
    %51 = arith.subf %47, %50 : vector<8x8xf32>
    %52 = math.exp %51 : vector<8x8xf32>
    %cst_20 = arith.constant dense<0.000000e+00> : vector<8xf32>
    %53 = vector.multi_reduction <add>, %52, %cst_20 [1] : vector<8x8xf32> to vector<8xf32>
    %54 = vector.shape_cast %53 : vector<8xf32> to vector<8x1xf32>
    %55 = tpu.reciprocal %54 {approx = true} : vector<8x1xf32> -> vector<8x1xf32>
    %56 = arith.mulf %54, %55 : vector<8x1xf32>
    %cst_21 = arith.constant 2.000000e+00 : f32
    %57 = vector.broadcast %cst_21 : f32 to vector<8x1xf32>
    %58 = arith.subf %57, %56 : vector<8x1xf32>
    %59 = arith.mulf %55, %58 : vector<8x1xf32>
    %60 = vector.broadcast %59 : vector<8x1xf32> to vector<8x8xf32>
    %61 = arith.mulf %52, %60 : vector<8x8xf32>
    %cst_22 = arith.constant dense<0.000000e+00> : vector<8x8xf32>
    %62 = tpu.matmul %61, %44, %cst_22 {dimension_numbers = #tpu.dot_dimension_numbers<[1], [0], [0], [1], [0, 0, 1, 1], [], []>} : vector<8x8xf32>, vector<8x8xf32>, vector<8x8xf32> -> vector<8x8xf32>
    %63 = vector.extract_strided_slice %40 {offsets = [0, 0], sizes = [8, 32], strides = [1, 1]} : vector<32x32xf32> to vector<8x32xf32>
    %cst_23 = arith.constant dense<0.000000e+00> : vector<8x32xf32>
    %64 = tpu.matmul %62, %63, %cst_23 {dimension_numbers = #tpu.dot_dimension_numbers<[1], [0], [0], [1], [0, 0, 1, 1], [], []>} : vector<8x8xf32>, vector<8x32xf32>, vector<8x32xf32> -> vector<8x32xf32>
    %65 = vector.extract_strided_slice %33 {offsets = [0, 8], sizes = [8, 8], strides = [1, 1]} : vector<16x96xf32> to vector<8x8xf32>
    %66 = vector.extract_strided_slice %33 {offsets = [0, 40], sizes = [8, 8], strides = [1, 1]} : vector<16x96xf32> to vector<8x8xf32>
    %67 = vector.extract_strided_slice %33 {offsets = [0, 72], sizes = [8, 8], strides = [1, 1]} : vector<16x96xf32> to vector<8x8xf32>
    %cst_24 = arith.constant dense<0.000000e+00> : vector<8x8xf32>
    %68 = tpu.matmul %65, %66, %cst_24 {dimension_numbers = #tpu.dot_dimension_numbers<[1], [1], [0], [0], [0, 0, 1, 0], [], []>} : vector<8x8xf32>, vector<8x8xf32>, vector<8x8xf32> -> vector<8x8xf32>
    %69 = vector.broadcast %41 : vector<1x8xf32> to vector<8x8xf32>
    %70 = arith.addf %68, %69 : vector<8x8xf32>
    %cst_25 = arith.constant dense<0xFF800000> : vector<8xf32>
    %71 = vector.multi_reduction <maximumf>, %70, %cst_25 [1] : vector<8x8xf32> to vector<8xf32>
    %72 = vector.shape_cast %71 : vector<8xf32> to vector<8x1xf32>
    %73 = vector.broadcast %72 : vector<8x1xf32> to vector<8x8xf32>
    %74 = arith.subf %70, %73 : vector<8x8xf32>
    %75 = math.exp %74 : vector<8x8xf32>
    %cst_26 = arith.constant dense<0.000000e+00> : vector<8xf32>
    %76 = vector.multi_reduction <add>, %75, %cst_26 [1] : vector<8x8xf32> to vector<8xf32>
    %77 = vector.shape_cast %76 : vector<8xf32> to vector<8x1xf32>
    %78 = tpu.reciprocal %77 {approx = true} : vector<8x1xf32> -> vector<8x1xf32>
    %79 = arith.mulf %77, %78 : vector<8x1xf32>
    %cst_27 = arith.constant 2.000000e+00 : f32
    %80 = vector.broadcast %cst_27 : f32 to vector<8x1xf32>
    %81 = arith.subf %80, %79 : vector<8x1xf32>
    %82 = arith.mulf %78, %81 : vector<8x1xf32>
    %83 = vector.broadcast %82 : vector<8x1xf32> to vector<8x8xf32>
    %84 = arith.mulf %75, %83 : vector<8x8xf32>
    %cst_28 = arith.constant dense<0.000000e+00> : vector<8x8xf32>
    %85 = tpu.matmul %84, %67, %cst_28 {dimension_numbers = #tpu.dot_dimension_numbers<[1], [0], [0], [1], [0, 0, 1, 1], [], []>} : vector<8x8xf32>, vector<8x8xf32>, vector<8x8xf32> -> vector<8x8xf32>
    %86 = vector.extract_strided_slice %40 {offsets = [8, 0], sizes = [8, 32], strides = [1, 1]} : vector<32x32xf32> to vector<8x32xf32>
    %cst_29 = arith.constant dense<0.000000e+00> : vector<8x32xf32>
    %87 = tpu.matmul %85, %86, %cst_29 {dimension_numbers = #tpu.dot_dimension_numbers<[1], [0], [0], [1], [0, 0, 1, 1], [], []>} : vector<8x8xf32>, vector<8x32xf32>, vector<8x32xf32> -> vector<8x32xf32>
    %88 = arith.addf %64, %87 : vector<8x32xf32>
    %89 = vector.extract_strided_slice %33 {offsets = [0, 16], sizes = [8, 8], strides = [1, 1]} : vector<16x96xf32> to vector<8x8xf32>
    %90 = vector.extract_strided_slice %33 {offsets = [0, 48], sizes = [8, 8], strides = [1, 1]} : vector<16x96xf32> to vector<8x8xf32>
    %91 = vector.extract_strided_slice %33 {offsets = [0, 80], sizes = [8, 8], strides = [1, 1]} : vector<16x96xf32> to vector<8x8xf32>
    %cst_30 = arith.constant dense<0.000000e+00> : vector<8x8xf32>
    %92 = tpu.matmul %89, %90, %cst_30 {dimension_numbers = #tpu.dot_dimension_numbers<[1], [1], [0], [0], [0, 0, 1, 0], [], []>} : vector<8x8xf32>, vector<8x8xf32>, vector<8x8xf32> -> vector<8x8xf32>
    %93 = vector.broadcast %41 : vector<1x8xf32> to vector<8x8xf32>
    %94 = arith.addf %92, %93 : vector<8x8xf32>
    %cst_31 = arith.constant dense<0xFF800000> : vector<8xf32>
    %95 = vector.multi_reduction <maximumf>, %94, %cst_31 [1] : vector<8x8xf32> to vector<8xf32>
    %96 = vector.shape_cast %95 : vector<8xf32> to vector<8x1xf32>
    %97 = vector.broadcast %96 : vector<8x1xf32> to vector<8x8xf32>
    %98 = arith.subf %94, %97 : vector<8x8xf32>
    %99 = math.exp %98 : vector<8x8xf32>
    %cst_32 = arith.constant dense<0.000000e+00> : vector<8xf32>
    %100 = vector.multi_reduction <add>, %99, %cst_32 [1] : vector<8x8xf32> to vector<8xf32>
    %101 = vector.shape_cast %100 : vector<8xf32> to vector<8x1xf32>
    %102 = tpu.reciprocal %101 {approx = true} : vector<8x1xf32> -> vector<8x1xf32>
    %103 = arith.mulf %101, %102 : vector<8x1xf32>
    %cst_33 = arith.constant 2.000000e+00 : f32
    %104 = vector.broadcast %cst_33 : f32 to vector<8x1xf32>
    %105 = arith.subf %104, %103 : vector<8x1xf32>
    %106 = arith.mulf %102, %105 : vector<8x1xf32>
    %107 = vector.broadcast %106 : vector<8x1xf32> to vector<8x8xf32>
    %108 = arith.mulf %99, %107 : vector<8x8xf32>
    %cst_34 = arith.constant dense<0.000000e+00> : vector<8x8xf32>
    %109 = tpu.matmul %108, %91, %cst_34 {dimension_numbers = #tpu.dot_dimension_numbers<[1], [0], [0], [1], [0, 0, 1, 1], [], []>} : vector<8x8xf32>, vector<8x8xf32>, vector<8x8xf32> -> vector<8x8xf32>
    %110 = vector.extract_strided_slice %40 {offsets = [16, 0], sizes = [8, 32], strides = [1, 1]} : vector<32x32xf32> to vector<8x32xf32>
    %cst_35 = arith.constant dense<0.000000e+00> : vector<8x32xf32>
    %111 = tpu.matmul %109, %110, %cst_35 {dimension_numbers = #tpu.dot_dimension_numbers<[1], [0], [0], [1], [0, 0, 1, 1], [], []>} : vector<8x8xf32>, vector<8x32xf32>, vector<8x32xf32> -> vector<8x32xf32>
    %112 = arith.addf %88, %111 : vector<8x32xf32>
    %113 = vector.extract_strided_slice %33 {offsets = [0, 24], sizes = [8, 8], strides = [1, 1]} : vector<16x96xf32> to vector<8x8xf32>
    %114 = vector.extract_strided_slice %33 {offsets = [0, 56], sizes = [8, 8], strides = [1, 1]} : vector<16x96xf32> to vector<8x8xf32>
    %115 = vector.extract_strided_slice %33 {offsets = [0, 88], sizes = [8, 8], strides = [1, 1]} : vector<16x96xf32> to vector<8x8xf32>
    %cst_36 = arith.constant dense<0.000000e+00> : vector<8x8xf32>
    %116 = tpu.matmul %113, %114, %cst_36 {dimension_numbers = #tpu.dot_dimension_numbers<[1], [1], [0], [0], [0, 0, 1, 0], [], []>} : vector<8x8xf32>, vector<8x8xf32>, vector<8x8xf32> -> vector<8x8xf32>
    %117 = vector.broadcast %41 : vector<1x8xf32> to vector<8x8xf32>
    %118 = arith.addf %116, %117 : vector<8x8xf32>
    %cst_37 = arith.constant dense<0xFF800000> : vector<8xf32>
    %119 = vector.multi_reduction <maximumf>, %118, %cst_37 [1] : vector<8x8xf32> to vector<8xf32>
    %120 = vector.shape_cast %119 : vector<8xf32> to vector<8x1xf32>
    %121 = vector.broadcast %120 : vector<8x1xf32> to vector<8x8xf32>
    %122 = arith.subf %118, %121 : vector<8x8xf32>
    %123 = math.exp %122 : vector<8x8xf32>
    %cst_38 = arith.constant dense<0.000000e+00> : vector<8xf32>
    %124 = vector.multi_reduction <add>, %123, %cst_38 [1] : vector<8x8xf32> to vector<8xf32>
    %125 = vector.shape_cast %124 : vector<8xf32> to vector<8x1xf32>
    %126 = tpu.reciprocal %125 {approx = true} : vector<8x1xf32> -> vector<8x1xf32>
    %127 = arith.mulf %125, %126 : vector<8x1xf32>
    %cst_39 = arith.constant 2.000000e+00 : f32
    %128 = vector.broadcast %cst_39 : f32 to vector<8x1xf32>
    %129 = arith.subf %128, %127 : vector<8x1xf32>
    %130 = arith.mulf %126, %129 : vector<8x1xf32>
    %131 = vector.broadcast %130 : vector<8x1xf32> to vector<8x8xf32>
    %132 = arith.mulf %123, %131 : vector<8x8xf32>
    %cst_40 = arith.constant dense<0.000000e+00> : vector<8x8xf32>
    %133 = tpu.matmul %132, %115, %cst_40 {dimension_numbers = #tpu.dot_dimension_numbers<[1], [0], [0], [1], [0, 0, 1, 1], [], []>} : vector<8x8xf32>, vector<8x8xf32>, vector<8x8xf32> -> vector<8x8xf32>
    %134 = vector.extract_strided_slice %40 {offsets = [24, 0], sizes = [8, 32], strides = [1, 1]} : vector<32x32xf32> to vector<8x32xf32>
    %cst_41 = arith.constant dense<0.000000e+00> : vector<8x32xf32>
    %135 = tpu.matmul %133, %134, %cst_41 {dimension_numbers = #tpu.dot_dimension_numbers<[1], [0], [0], [1], [0, 0, 1, 1], [], []>} : vector<8x8xf32>, vector<8x32xf32>, vector<8x32xf32> -> vector<8x32xf32>
    %136 = arith.addf %112, %135 : vector<8x32xf32>
    %c0_42 = arith.constant 0 : index
    %c0_43 = arith.constant 0 : index
    %137 = vector.load %arg10[%c0_42, %c0_43] : memref<16x32xf32, #tpu.memory_space<vmem>>, vector<8x32xf32>
    tpu.vector_store %arg10[%c0_42, %c0_43], %136 {strides = array<i32>} : memref<16x32xf32, #tpu.memory_space<vmem>>, vector<8x32xf32>,
    %138 = vector.extract_strided_slice %39 {offsets = [1, 0], sizes = [1, 8], strides = [1, 1]} : vector<2x8xf32> to vector<1x8xf32>
    %139 = vector.extract_strided_slice %33 {offsets = [8, 0], sizes = [8, 8], strides = [1, 1]} : vector<16x96xf32> to vector<8x8xf32>
    %140 = vector.extract_strided_slice %33 {offsets = [8, 32], sizes = [8, 8], strides = [1, 1]} : vector<16x96xf32> to vector<8x8xf32>
    %141 = vector.extract_strided_slice %33 {offsets = [8, 64], sizes = [8, 8], strides = [1, 1]} : vector<16x96xf32> to vector<8x8xf32>
    %cst_44 = arith.constant dense<0.000000e+00> : vector<8x8xf32>
    %142 = tpu.matmul %139, %140, %cst_44 {dimension_numbers = #tpu.dot_dimension_numbers<[1], [1], [0], [0], [0, 0, 1, 0], [], []>} : vector<8x8xf32>, vector<8x8xf32>, vector<8x8xf32> -> vector<8x8xf32>
    %143 = vector.broadcast %138 : vector<1x8xf32> to vector<8x8xf32>
    %144 = arith.addf %142, %143 : vector<8x8xf32>
    %cst_45 = arith.constant dense<0xFF800000> : vector<8xf32>
    %145 = vector.multi_reduction <maximumf>, %144, %cst_45 [1] : vector<8x8xf32> to vector<8xf32>
    %146 = vector.shape_cast %145 : vector<8xf32> to vector<8x1xf32>
    %147 = vector.broadcast %146 : vector<8x1xf32> to vector<8x8xf32>
    %148 = arith.subf %144, %147 : vector<8x8xf32>
    %149 = math.exp %148 : vector<8x8xf32>
    %cst_46 = arith.constant dense<0.000000e+00> : vector<8xf32>
    %150 = vector.multi_reduction <add>, %149, %cst_46 [1] : vector<8x8xf32> to vector<8xf32>
    %151 = vector.shape_cast %150 : vector<8xf32> to vector<8x1xf32>
    %152 = tpu.reciprocal %151 {approx = true} : vector<8x1xf32> -> vector<8x1xf32>
    %153 = arith.mulf %151, %152 : vector<8x1xf32>
    %cst_47 = arith.constant 2.000000e+00 : f32
    %154 = vector.broadcast %cst_47 : f32 to vector<8x1xf32>
    %155 = arith.subf %154, %153 : vector<8x1xf32>
    %156 = arith.mulf %152, %155 : vector<8x1xf32>
    %157 = vector.broadcast %156 : vector<8x1xf32> to vector<8x8xf32>
    %158 = arith.mulf %149, %157 : vector<8x8xf32>
    %cst_48 = arith.constant dense<0.000000e+00> : vector<8x8xf32>
    %159 = tpu.matmul %158, %141, %cst_48 {dimension_numbers = #tpu.dot_dimension_numbers<[1], [0], [0], [1], [0, 0, 1, 1], [], []>} : vector<8x8xf32>, vector<8x8xf32>, vector<8x8xf32> -> vector<8x8xf32>
    %160 = vector.extract_strided_slice %40 {offsets = [0, 0], sizes = [8, 32], strides = [1, 1]} : vector<32x32xf32> to vector<8x32xf32>
    %cst_49 = arith.constant dense<0.000000e+00> : vector<8x32xf32>
    %161 = tpu.matmul %159, %160, %cst_49 {dimension_numbers = #tpu.dot_dimension_numbers<[1], [0], [0], [1], [0, 0, 1, 1], [], []>} : vector<8x8xf32>, vector<8x32xf32>, vector<8x32xf32> -> vector<8x32xf32>
    %162 = vector.extract_strided_slice %33 {offsets = [8, 8], sizes = [8, 8], strides = [1, 1]} : vector<16x96xf32> to vector<8x8xf32>
    %163 = vector.extract_strided_slice %33 {offsets = [8, 40], sizes = [8, 8], strides = [1, 1]} : vector<16x96xf32> to vector<8x8xf32>
    %164 = vector.extract_strided_slice %33 {offsets = [8, 72], sizes = [8, 8], strides = [1, 1]} : vector<16x96xf32> to vector<8x8xf32>
    %cst_50 = arith.constant dense<0.000000e+00> : vector<8x8xf32>
    %165 = tpu.matmul %162, %163, %cst_50 {dimension_numbers = #tpu.dot_dimension_numbers<[1], [1], [0], [0], [0, 0, 1, 0], [], []>} : vector<8x8xf32>, vector<8x8xf32>, vector<8x8xf32> -> vector<8x8xf32>
    %166 = vector.broadcast %138 : vector<1x8xf32> to vector<8x8xf32>
    %167 = arith.addf %165, %166 : vector<8x8xf32>
    %cst_51 = arith.constant dense<0xFF800000> : vector<8xf32>
    %168 = vector.multi_reduction <maximumf>, %167, %cst_51 [1] : vector<8x8xf32> to vector<8xf32>
    %169 = vector.shape_cast %168 : vector<8xf32> to vector<8x1xf32>
    %170 = vector.broadcast %169 : vector<8x1xf32> to vector<8x8xf32>
    %171 = arith.subf %167, %170 : vector<8x8xf32>
    %172 = math.exp %171 : vector<8x8xf32>
    %cst_52 = arith.constant dense<0.000000e+00> : vector<8xf32>
    %173 = vector.multi_reduction <add>, %172, %cst_52 [1] : vector<8x8xf32> to vector<8xf32>
    %174 = vector.shape_cast %173 : vector<8xf32> to vector<8x1xf32>
    %175 = tpu.reciprocal %174 {approx = true} : vector<8x1xf32> -> vector<8x1xf32>
    %176 = arith.mulf %174, %175 : vector<8x1xf32>
    %cst_53 = arith.constant 2.000000e+00 : f32
    %177 = vector.broadcast %cst_53 : f32 to vector<8x1xf32>
    %178 = arith.subf %177, %176 : vector<8x1xf32>
    %179 = arith.mulf %175, %178 : vector<8x1xf32>
    %180 = vector.broadcast %179 : vector<8x1xf32> to vector<8x8xf32>
    %181 = arith.mulf %172, %180 : vector<8x8xf32>
    %cst_54 = arith.constant dense<0.000000e+00> : vector<8x8xf32>
    %182 = tpu.matmul %181, %164, %cst_54 {dimension_numbers = #tpu.dot_dimension_numbers<[1], [0], [0], [1], [0, 0, 1, 1], [], []>} : vector<8x8xf32>, vector<8x8xf32>, vector<8x8xf32> -> vector<8x8xf32>
    %183 = vector.extract_strided_slice %40 {offsets = [8, 0], sizes = [8, 32], strides = [1, 1]} : vector<32x32xf32> to vector<8x32xf32>
    %cst_55 = arith.constant dense<0.000000e+00> : vector<8x32xf32>
    %184 = tpu.matmul %182, %183, %cst_55 {dimension_numbers = #tpu.dot_dimension_numbers<[1], [0], [0], [1], [0, 0, 1, 1], [], []>} : vector<8x8xf32>, vector<8x32xf32>, vector<8x32xf32> -> vector<8x32xf32>
    %185 = arith.addf %161, %184 : vector<8x32xf32>
    %186 = vector.extract_strided_slice %33 {offsets = [8, 16], sizes = [8, 8], strides = [1, 1]} : vector<16x96xf32> to vector<8x8xf32>
    %187 = vector.extract_strided_slice %33 {offsets = [8, 48], sizes = [8, 8], strides = [1, 1]} : vector<16x96xf32> to vector<8x8xf32>
    %188 = vector.extract_strided_slice %33 {offsets = [8, 80], sizes = [8, 8], strides = [1, 1]} : vector<16x96xf32> to vector<8x8xf32>
    %cst_56 = arith.constant dense<0.000000e+00> : vector<8x8xf32>
    %189 = tpu.matmul %186, %187, %cst_56 {dimension_numbers = #tpu.dot_dimension_numbers<[1], [1], [0], [0], [0, 0, 1, 0], [], []>} : vector<8x8xf32>, vector<8x8xf32>, vector<8x8xf32> -> vector<8x8xf32>
    %190 = vector.broadcast %138 : vector<1x8xf32> to vector<8x8xf32>
    %191 = arith.addf %189, %190 : vector<8x8xf32>
    %cst_57 = arith.constant dense<0xFF800000> : vector<8xf32>
    %192 = vector.multi_reduction <maximumf>, %191, %cst_57 [1] : vector<8x8xf32> to vector<8xf32>
    %193 = vector.shape_cast %192 : vector<8xf32> to vector<8x1xf32>
    %194 = vector.broadcast %193 : vector<8x1xf32> to vector<8x8xf32>
    %195 = arith.subf %191, %194 : vector<8x8xf32>
    %196 = math.exp %195 : vector<8x8xf32>
    %cst_58 = arith.constant dense<0.000000e+00> : vector<8xf32>
    %197 = vector.multi_reduction <add>, %196, %cst_58 [1] : vector<8x8xf32> to vector<8xf32>
    %198 = vector.shape_cast %197 : vector<8xf32> to vector<8x1xf32>
    %199 = tpu.reciprocal %198 {approx = true} : vector<8x1xf32> -> vector<8x1xf32>
    %200 = arith.mulf %198, %199 : vector<8x1xf32>
    %cst_59 = arith.constant 2.000000e+00 : f32
    %201 = vector.broadcast %cst_59 : f32 to vector<8x1xf32>
    %202 = arith.subf %201, %200 : vector<8x1xf32>
    %203 = arith.mulf %199, %202 : vector<8x1xf32>
    %204 = vector.broadcast %203 : vector<8x1xf32> to vector<8x8xf32>
    %205 = arith.mulf %196, %204 : vector<8x8xf32>
    %cst_60 = arith.constant dense<0.000000e+00> : vector<8x8xf32>
    %206 = tpu.matmul %205, %188, %cst_60 {dimension_numbers = #tpu.dot_dimension_numbers<[1], [0], [0], [1], [0, 0, 1, 1], [], []>} : vector<8x8xf32>, vector<8x8xf32>, vector<8x8xf32> -> vector<8x8xf32>
    %207 = vector.extract_strided_slice %40 {offsets = [16, 0], sizes = [8, 32], strides = [1, 1]} : vector<32x32xf32> to vector<8x32xf32>
    %cst_61 = arith.constant dense<0.000000e+00> : vector<8x32xf32>
    %208 = tpu.matmul %206, %207, %cst_61 {dimension_numbers = #tpu.dot_dimension_numbers<[1], [0], [0], [1], [0, 0, 1, 1], [], []>} : vector<8x8xf32>, vector<8x32xf32>, vector<8x32xf32> -> vector<8x32xf32>
    %209 = arith.addf %185, %208 : vector<8x32xf32>
    %210 = vector.extract_strided_slice %33 {offsets = [8, 24], sizes = [8, 8], strides = [1, 1]} : vector<16x96xf32> to vector<8x8xf32>
    %211 = vector.extract_strided_slice %33 {offsets = [8, 56], sizes = [8, 8], strides = [1, 1]} : vector<16x96xf32> to vector<8x8xf32>
    %212 = vector.extract_strided_slice %33 {offsets = [8, 88], sizes = [8, 8], strides = [1, 1]} : vector<16x96xf32> to vector<8x8xf32>
    %cst_62 = arith.constant dense<0.000000e+00> : vector<8x8xf32>
    %213 = tpu.matmul %210, %211, %cst_62 {dimension_numbers = #tpu.dot_dimension_numbers<[1], [1], [0], [0], [0, 0, 1, 0], [], []>} : vector<8x8xf32>, vector<8x8xf32>, vector<8x8xf32> -> vector<8x8xf32>
    %214 = vector.broadcast %138 : vector<1x8xf32> to vector<8x8xf32>
    %215 = arith.addf %213, %214 : vector<8x8xf32>
    %cst_63 = arith.constant dense<0xFF800000> : vector<8xf32>
    %216 = vector.multi_reduction <maximumf>, %215, %cst_63 [1] : vector<8x8xf32> to vector<8xf32>
    %217 = vector.shape_cast %216 : vector<8xf32> to vector<8x1xf32>
    %218 = vector.broadcast %217 : vector<8x1xf32> to vector<8x8xf32>
    %219 = arith.subf %215, %218 : vector<8x8xf32>
    %220 = math.exp %219 : vector<8x8xf32>
    %cst_64 = arith.constant dense<0.000000e+00> : vector<8xf32>
    %221 = vector.multi_reduction <add>, %220, %cst_64 [1] : vector<8x8xf32> to vector<8xf32>
    %222 = vector.shape_cast %221 : vector<8xf32> to vector<8x1xf32>
    %223 = tpu.reciprocal %222 {approx = true} : vector<8x1xf32> -> vector<8x1xf32>
    %224 = arith.mulf %222, %223 : vector<8x1xf32>
    %cst_65 = arith.constant 2.000000e+00 : f32
    %225 = vector.broadcast %cst_65 : f32 to vector<8x1xf32>
    %226 = arith.subf %225, %224 : vector<8x1xf32>
    %227 = arith.mulf %223, %226 : vector<8x1xf32>
    %228 = vector.broadcast %227 : vector<8x1xf32> to vector<8x8xf32>
    %229 = arith.mulf %220, %228 : vector<8x8xf32>
    %cst_66 = arith.constant dense<0.000000e+00> : vector<8x8xf32>
    %230 = tpu.matmul %229, %212, %cst_66 {dimension_numbers = #tpu.dot_dimension_numbers<[1], [0], [0], [1], [0, 0, 1, 1], [], []>} : vector<8x8xf32>, vector<8x8xf32>, vector<8x8xf32> -> vector<8x8xf32>
    %231 = vector.extract_strided_slice %40 {offsets = [24, 0], sizes = [8, 32], strides = [1, 1]} : vector<32x32xf32> to vector<8x32xf32>
    %cst_67 = arith.constant dense<0.000000e+00> : vector<8x32xf32>
    %232 = tpu.matmul %230, %231, %cst_67 {dimension_numbers = #tpu.dot_dimension_numbers<[1], [0], [0], [1], [0, 0, 1, 1], [], []>} : vector<8x8xf32>, vector<8x32xf32>, vector<8x32xf32> -> vector<8x32xf32>
    %233 = arith.addf %209, %232 : vector<8x32xf32>
    %c8 = arith.constant 8 : index
    %c0_68 = arith.constant 0 : index
    %234 = vector.load %arg10[%c8, %c0_68] : memref<16x32xf32, #tpu.memory_space<vmem>>, vector<8x32xf32>
    tpu.vector_store %arg10[%c8, %c0_68], %233 {strides = array<i32>} : memref<16x32xf32, #tpu.memory_space<vmem>>, vector<8x32xf32>,
    %c0_69 = arith.constant 0 : index
    %c0_70 = arith.constant 0 : index
    %235 = vector.load %arg10[%c0_69, %c0_70] : memref<16x32xf32, #tpu.memory_space<vmem>>, vector<16x32xf32>
    %236 = arith.addf %0, %235 : vector<16x32xf32>
    %237 = vector.broadcast %2 : vector<1x32xf32> to vector<16x32xf32>
    %238 = arith.addf %236, %237 : vector<16x32xf32>
    %cst_71 = arith.constant dense<0.000000e+00> : vector<16xf32>
    %239 = vector.multi_reduction <add>, %238, %cst_71 [1] : vector<16x32xf32> to vector<16xf32>
    %240 = vector.shape_cast %239 : vector<16xf32> to vector<16x1xf32>
    %cst_72 = arith.constant 3.200000e+01 : f32
    %241 = vector.broadcast %cst_72 : f32 to vector<16x1xf32>
    %242 = arith.divf %240, %241 : vector<16x1xf32>
    %243 = vector.broadcast %242 : vector<16x1xf32> to vector<16x32xf32>
    %244 = arith.subf %238, %243 : vector<16x32xf32>
    %245 = arith.mulf %244, %244 : vector<16x32xf32>
    %cst_73 = arith.constant dense<0.000000e+00> : vector<16xf32>
    %246 = vector.multi_reduction <add>, %245, %cst_73 [1] : vector<16x32xf32> to vector<16xf32>
    %247 = vector.shape_cast %246 : vector<16xf32> to vector<16x1xf32>
    %cst_74 = arith.constant 0.0322580636 : f32
    %248 = vector.broadcast %cst_74 : f32 to vector<16x1xf32>
    %249 = arith.mulf %247, %248 : vector<16x1xf32>
    %250 = math.sqrt %249 : vector<16x1xf32>
    %cst_75 = arith.constant 9.99999997E-7 : f32
    %251 = vector.broadcast %cst_75 : f32 to vector<16x1xf32>
    %252 = arith.addf %250, %251 : vector<16x1xf32>
    %253 = tpu.reciprocal %252 : vector<16x1xf32> -> vector<16x1xf32>
    %254 = vector.broadcast %5 : vector<1x32xf32> to vector<16x32xf32>
    %255 = arith.mulf %254, %244 : vector<16x32xf32>
    %256 = vector.broadcast %253 : vector<16x1xf32> to vector<16x32xf32>
    %257 = arith.mulf %255, %256 : vector<16x32xf32>
    %258 = vector.broadcast %6 : vector<1x32xf32> to vector<16x32xf32>
    %259 = arith.addf %257, %258 : vector<16x32xf32>
    %c0_76 = arith.constant 0 : index
    %c0_77 = arith.constant 0 : index
    %260 = vector.load %arg5[%c0_76, %c0_77] : memref<32x64xf32, #tpu.memory_space<vmem>>, vector<32x64xf32>
    %cst_78 = arith.constant dense<0.000000e+00> : vector<16x64xf32>
    %261 = tpu.matmul %259, %260, %cst_78 {dimension_numbers = #tpu.dot_dimension_numbers<[1], [0], [0], [1], [0, 0, 1, 1], [], []>} : vector<16x32xf32>, vector<32x64xf32>, vector<16x64xf32> -> vector<16x64xf32>
    %c0_79 = arith.constant 0 : index
    %c0_80 = arith.constant 0 : index
    %262 = vector.load %arg6[%c0_79, %c0_80] : memref<1x64xf32, #tpu.memory_space<vmem>>, vector<1x64xf32>
    %263 = vector.broadcast %262 : vector<1x64xf32> to vector<16x64xf32>
    %264 = arith.addf %261, %263 : vector<16x64xf32>
    %cst_81 = arith.constant 0.000000e+00 : f32
    %265 = vector.broadcast %cst_81 : f32 to vector<16x64xf32>
    %266 = arith.maximumf %264, %265 : vector<16x64xf32>
    %c0_82 = arith.constant 0 : index
    %c0_83 = arith.constant 0 : index
    %267 = vector.load %arg7[%c0_82, %c0_83] : memref<64x32xf32, #tpu.memory_space<vmem>>, vector<64x32xf32>
    %cst_84 = arith.constant dense<0.000000e+00> : vector<16x32xf32>
    %268 = tpu.matmul %266, %267, %cst_84 {dimension_numbers = #tpu.dot_dimension_numbers<[1], [0], [0], [1], [0, 0, 1, 1], [], []>} : vector<16x64xf32>, vector<64x32xf32>, vector<16x32xf32> -> vector<16x32xf32>
    %269 = vector.broadcast %7 : vector<1x32xf32> to vector<16x32xf32>
    %270 = arith.addf %268, %269 : vector<16x32xf32>
    %271 = arith.addf %238, %270 : vector<16x32xf32>
    %c0_85 = arith.constant 0 : index
    %c0_86 = arith.constant 0 : index
    %272 = vector.load %arg9[%c0_85, %c0_86] : memref<16x32xf32, #tpu.memory_space<vmem>>, vector<16x32xf32>
    tpu.vector_store %arg9[%c0_85, %c0_86], %271 {strides = array<i32>} : memref<16x32xf32, #tpu.memory_space<vmem>>, vector<16x32xf32>,
    return
  }
}

</mosaic_0001>

<llo_original>
// kernel: tpu_custom_call.1
$region0: #{tpu_custom_call.1}
  #allocation0 [shape = 'u32[]', space=smem, size = 0x4, offset = 0x4, fixed_abs, tag = 'smem constant byte address 0x4 - core index']
  #allocation1 [shape = 'u32[144,128]{1,0:T(1,128)}', space=vmem, size = 0x12000, scoped, tag = 'internal scratch']
  #allocation2 [shape = 'f32[16,32]{1,0:T(8,128)}', space=vmem, size = 0x2000, scoped, tag = 'scratch operand']
  %s0 = inlined_call_operand.hbm [shape: f32[16,32], index: 0, kind: input, shape index: {}]
  %s1 = inlined_call_operand.vmem [shape: s32[2,8], index: 1, kind: input, shape index: {}]
  %s2 = inlined_call_operand.vmem [shape: f32[32,96], index: 2, kind: input, shape index: {}]
  %s3 = inlined_call_operand.vmem [shape: f32[1,96], index: 3, kind: input, shape index: {}]
  %s4 = inlined_call_operand.vmem [shape: f32[32,32], index: 4, kind: input, shape index: {}]
  %s5 = inlined_call_operand.vmem [shape: f32[32,64], index: 5, kind: input, shape index: {}]
  %s6 = inlined_call_operand.vmem [shape: f32[1,64], index: 6, kind: input, shape index: {}]
  %s7 = inlined_call_operand.vmem [shape: f32[64,32], index: 7, kind: input, shape index: {}]
  %s8 = inlined_call_operand.vmem [shape: f32[6,32], index: 8, kind: input, shape index: {}]
  %s9 = inlined_call_operand.hbm [shape: f32[16,32], index: 9, kind: output, shape index: {}]
  %s10 = sld [smem:[#allocation0]]
  $region50: #{tpu_custom_call.1} parent=0
    _
  %s12 = ssub.s32 1, %s10
  %s13 = scalar_select 0, %s12, %s10
  $region1: #{tpu_custom_call.1} parent=0
    #allocation3 [shape = 'u8[8192]{0}', space=vmem, size = 0x2000, scoped, tag = 'input window, operand 0, single buffered']
    #allocation4 [shape = 's32[1]{0}', space=sflag, size = 0x4, scoped, tag = 'scoped memory for tpu_custom_call.1']
    #allocation5 [shape = 's32[1]{0}', space=sflag, size = 0x4, scoped, tag = 'scoped memory for tpu_custom_call.1']
    #allocation6 [shape = 'u8[8192]{0}', space=vmem, size = 0x2000, scoped, tag = 'output window, operand 0, single buffered']
    %14 = vsyncpa [#allocation4], 0
    %15 = vsyncpa [#allocation5], 0
    // Predicated region
    $region2: #{tpu_custom_call.1} parent=1 // pred_check
      _
    $region3: #{tpu_custom_call.1} parent=1 // pred_check_branch
      %17 = sbr.rel (0) target = $region5
    $region4: #{tpu_custom_call.1} parent=1 // pred_region
      %s19 = ssub.s32 256, 256
      %20 = vsyncadd [#allocation4], %s19
      %s21 = sshll.u32 [#allocation3], 4
      %s22 = int_to_ptr.vmem [resolvable:$true] %s21
      %27 = dma.hbm_to_vmem [thread:$0]  %s0, 256, %s22, [#allocation4], 128, 128, 8
    $region5: #{tpu_custom_call.1} parent=1 // pred_fallthru
      _
    // Predicated region
    $region6: #{tpu_custom_call.1} parent=1 // pred_check
      _
    $region7: #{tpu_custom_call.1} parent=1 // pred_check_branch
      %29 = sbr.rel (0) target = $region9
    $region8: #{tpu_custom_call.1} parent=1 // pred_region
      _
    $region9: #{tpu_custom_call.1} parent=1 // pred_fallthru
      _
    // Predicated region
    $region10: #{tpu_custom_call.1} parent=1 // pred_check
      _
    $region11: #{tpu_custom_call.1} parent=1 // pred_check_branch
      %31 = sbr.rel (0) target = $region13
    $region12: #{tpu_custom_call.1} parent=1 // pred_region
      _
    $region13: #{tpu_custom_call.1} parent=1 // pred_fallthru
      _
    // Predicated region
    $region14: #{tpu_custom_call.1} parent=1 // pred_check
      _
    $region15: #{tpu_custom_call.1} parent=1 // pred_check_branch
      %33 = sbr.rel (0) target = $region17
    $region16: #{tpu_custom_call.1} parent=1 // pred_region
      _
    $region17: #{tpu_custom_call.1} parent=1 // pred_fallthru
      _
    // Predicated region
    $region18: #{tpu_custom_call.1} parent=1 // pred_check
      _
    $region19: #{tpu_custom_call.1} parent=1 // pred_check_branch
      %35 = sbr.rel (0) target = $region21
    $region20: #{tpu_custom_call.1} parent=1 // pred_region
      _
    $region21: #{tpu_custom_call.1} parent=1 // pred_fallthru
      _
    // Predicated region
    $region22: #{tpu_custom_call.1} parent=1 // pred_check
      _
    $region23: #{tpu_custom_call.1} parent=1 // pred_check_branch
      %37 = sbr.rel (0) target = $region25
    $region24: #{tpu_custom_call.1} parent=1 // pred_region
      _
    $region25: #{tpu_custom_call.1} parent=1 // pred_fallthru
      _
    // Predicated region
    $region26: #{tpu_custom_call.1} parent=1 // pred_check
      _
    $region27: #{tpu_custom_call.1} parent=1 // pred_check_branch
      %39 = sbr.rel (0) target = $region29
    $region28: #{tpu_custom_call.1} parent=1 // pred_region
      _
    $region29: #{tpu_custom_call.1} parent=1 // pred_fallthru
      _
    // Predicated region
    $region30: #{tpu_custom_call.1} parent=1 // pred_check
      _
    $region31: #{tpu_custom_call.1} parent=1 // pred_check_branch
      %41 = sbr.rel (0) target = $region33
    $region32: #{tpu_custom_call.1} parent=1 // pred_region
      _
    $region33: #{tpu_custom_call.1} parent=1 // pred_fallthru
      _
    // Predicated region
    $region34: #{tpu_custom_call.1} parent=1 // pred_check
      _
    $region35: #{tpu_custom_call.1} parent=1 // pred_check_branch
      %43 = sbr.rel (0) target = $region37
    $region36: #{tpu_custom_call.1} parent=1 // pred_region
      _
    $region37: #{tpu_custom_call.1} parent=1 // pred_fallthru
      _
    // Predicated region
    $region38: #{tpu_custom_call.1} parent=1 // pred_check
      _
    $region39: #{tpu_custom_call.1} parent=1 // pred_check_branch
      %45 = sbr.rel (0) target = $region41
    $region40: #{tpu_custom_call.1} parent=1 // pred_region
      %46 = dma.done [#allocation4], 256
    $region41: #{tpu_custom_call.1} parent=1 // pred_fallthru
      _
    %v47 = vld [vmem:[#allocation3] sm:$0xff]
    %v48 = vld [vmem:[#allocation3 + $0x8] sm:$0xff]
    %v49 = vld [vmem:[%s8] sm:$0x3f]
    %vm50 = vcmask 261120
    %v51 = vsel %vm50, %v47, 0.0
    %52 = vadd.xlane.f32.xlu0 %v51
    %v53 = vpop.xlane.xlu0 %52
    %v54 = vsel %vm50, %v48, 0.0
    %55 = vadd.xlane.f32.xlu0 %v54
    %v56 = vpop.xlane.xlu0 %55
    %v57 = vrcp.pop 32.0
    %v58 = vmul.f32 %v53, %v57
    %v59 = vmul.f32 %v56, %v57
    %v60 = vsub.f32 %v47, %v58
    %v61 = vsub.f32 %v48, %v59
    %v62 = vmul.f32 %v60, %v60
    %v63 = vmul.f32 %v61, %v61
    %v64 = vsel %vm50, %v62, 0.0
    %65 = vadd.xlane.f32.xlu0 %v64
    %v66 = vpop.xlane.xlu0 %65
    %v67 = vsel %vm50, %v63, 0.0
    %68 = vadd.xlane.f32.xlu0 %v67
    %v69 = vpop.xlane.xlu0 %68
    %v70 = vmul.f32 %v66, 0.032258064
    %v71 = vmul.f32 %v69, 0.032258064
    %v72 = vrsqrt.pop %v70
    %v73 = vmul.f32 %v70, %v72
    %vm74 = vcmp.eq.f32.partialorder %v70, inf
    %v75 = vsel %vm74, %v70, %v73
    %vm76 = vcmp.eq.f32.partialorder %v70, 0.0
    %v77 = vand.u32 %v70, 2147483648
    %v78 = vsel %vm76, %v77, %v75
    %v79 = vrsqrt.pop %v71
    %v80 = vmul.f32 %v71, %v79
    %vm81 = vcmp.eq.f32.partialorder %v71, inf
    %v82 = vsel %vm81, %v71, %v80
    %vm83 = vcmp.eq.f32.partialorder %v71, 0.0
    %v84 = vand.u32 %v71, 2147483648
    %v85 = vsel %vm83, %v84, %v82
    %v86 = vadd.f32 %v78, 1e-06
    %v87 = vadd.f32 %v85, 1e-06
    %v88 = vrcp.pop %v86
    %v89 = vrcp.pop %v87
    %v90 = vlaneseq
    %v91 = vshrl.u32 %v90, 7
    %v92 = vsub.s32 1, %v91
    %v93 = vrot.slane %v49, %v92
    %v94 = vmul.f32 %v93, %v60
    %v95 = vmul.f32 %v93, %v61
    %v96 = vmul.f32 %v94, %v88
    %v97 = vmul.f32 %v95, %v89
    %v98 = vlaneseq
    %v99 = vshrl.u32 %v98, 7
    %v100 = vsub.s32 2, %v99
    %v101 = vrot.slane %v49, %v100
    %v102 = vadd.f32 %v96, %v101
    %v103 = vadd.f32 %v97, %v101
    %v104 = vld [vmem:[%s2] sm:$0xff]
    %v105 = vld [vmem:[%s2 + $0x8] sm:$0xff]
    %v106 = vld [vmem:[%s2 + $0x10] sm:$0xff]
    %v107 = vld [vmem:[%s2 + $0x18] sm:$0xff]
    %v108 = vld [vmem:[%s3] sm:$0x1]
    %v110 = vlaneseq
    %v111 = vshrl.u32 %v110, 7
    %v112 = vsub.s32 0, %v111
    %v113 = vrot.slane %v108, %v112
    %v116 = vsel %vm50, %v102, 0
    %v119 = vsel %vm50, %v103, 0
    %121 = vmatprep.subr.mxu0 0.0
    %122 = vmatpush1.msra.mxu0 %v104
    %123 = vmatprep.subr.mxu0 0.0
    %124 = vmatpush1.msra.mxu0 %v105
    %125 = vmatprep.subr.mxu0 0.0
    %126 = vmatpush1.msra.mxu0 %v106
    %127 = vmatprep.subr.mxu0 0.0
    %128 = vmatpush1.msra.mxu0 %v107
    %129 = vmatprep.subr.mxu0 0.0
    %130 = vmatpush1.msra.mxu0 0.0
    %131 = vmatprep.subr.mxu0 0.0
    %132 = vmatpush1.msra.mxu0 0.0
    %133 = vmatprep.subr.mxu0 0.0
    %134 = vmatpush1.msra.mxu0 0.0
    %135 = vmatprep.subr.mxu0 0.0
    %136 = vmatpush1.msra.mxu0 0.0
    %137 = vmatprep.subr.mxu0 0.0
    %138 = vmatpush1.msra.mxu0 0.0
    %139 = vmatprep.subr.mxu0 0.0
    %140 = vmatpush1.msra.mxu0 0.0
    %141 = vmatprep.subr.mxu0 0.0
    %142 = vmatpush1.msra.mxu0 0.0
    %143 = vmatprep.subr.mxu0 0.0
    %144 = vmatpush1.msra.mxu0 0.0
    %145 = vmatprep.subr.mxu0 0.0
    %146 = vmatpush1.msra.mxu0 0.0
    %147 = vmatprep.subr.mxu0 0.0
    %148 = vmatpush1.msra.mxu0 0.0
    %149 = vmatprep.subr.mxu0 0.0
    %150 = vmatpush1.msra.mxu0 0.0
    %151 = vmatprep.subr.mxu0 0.0
    %152 = vmatpush1.msra.mxu0 0.0
    %153 = vmatprep.subr.mxu0 0.0
    %154 = vmatpush1.msra.mxu0 0.0
    %155 = vmatprep.subr.mxu0 0.0
    %156 = vmatpush1.msra.mxu0 0.0
    %157 = vmatprep.subr.mxu0 0.0
    %158 = vmatpush1.msra.mxu0 0.0
    %159 = vmatprep.subr.mxu0 0.0
    %160 = vmatpush1.msra.mxu0 0.0
    %161 = vmatprep.subr.mxu0 0.0
    %162 = vmatpush1.msra.mxu0 0.0
    %163 = vmatprep.subr.mxu0 0.0
    %164 = vmatpush1.msra.mxu0 0.0
    %165 = vmatprep.subr.mxu0 0.0
    %166 = vmatpush1.msra.mxu0 0.0
    %167 = vmatprep.subr.mxu0 0.0
    %168 = vmatpush1.msra.mxu0 0.0
    %169 = vmatprep.subr.mxu0 0.0
    %170 = vmatpush1.msra.mxu0 0.0
    %171 = vmatprep.subr.mxu0 0.0
    %172 = vmatpush1.msra.mxu0 0.0
    %173 = vmatprep.subr.mxu0 0.0
    %174 = vmatpush1.msra.mxu0 0.0
    %175 = vmatprep.subr.mxu0 0.0
    %176 = vmatpush1.msra.mxu0 0.0
    %177 = vmatprep.subr.mxu0 0.0
    %178 = vmatpush1.msra.mxu0 0.0
    %179 = vmatprep.subr.mxu0 0.0
    %180 = vmatpush1.msra.mxu0 0.0
    %181 = vmatprep.subr.mxu0 0.0
    %182 = vmatpush1.msra.mxu0 0.0
    %183 = vmatprep.subr.mxu0 0.0
    %184 = vmatpush1.msra.mxu0 0.0
    %185 = vmatprep.mubr.f32.mxu0 0.0
    %186 = vmatmul.mubr.f32.gmra.mrb[0].mxu0 %v116
    %v187 = vpop.f32.mrb[0].mxu0
    %v188 = vadd.f32 %v113, %v187
    %v189 = vpop.f32.mrb[0].mxu0
    %190 = vmatprep.mubr.f32.mxu0 0.0
    %191 = vmatmul.mubr.f32.gmra.mrb[0].mxu0 %v119
    %v192 = vpop.f32.mrb[0].mxu0
    %v193 = vadd.f32 %v113, %v192
    %v194 = vpop.f32.mrb[0].mxu0
    %195 = vdwg.mxu0
    %v196 = vld [vmem:[%s1] sm:$0x3]
    %vm197 = vcmp.eq.s32.totalorder %v196, 0
    %v198 = vsel %vm197, -1e+09, 0.0
    %v199 = vld [vmem:[%s4] sm:$0xff]
    %v200 = vld [vmem:[%s4 + $0x8] sm:$0xff]
    %v201 = vld [vmem:[%s4 + $0x10] sm:$0xff]
    %v202 = vld [vmem:[%s4 + $0x18] sm:$0xff]
    %v203 = vlaneseq
    %v204 = vshrl.u32 %v203, 7
    %v205 = vsub.s32 0, %v204
    %v206 = vrot.slane %v198, %v205
    %208 = vrot.lane.b32.xlu0 %v188, 96
    %v209 = vpop.permute.xlu0 %208
    %vm210 = vcmask 64512
    %v211 = vsel %vm210, %v188, 0
    %v213 = vsel %vm210, %v209, 0
    %215 = vmatprep.subr.mxu0 0.0
    %216 = vmatpush1.xpose.msra.mxu0 %v213
    %217 = vmatprep.subr.mxu0 0.0
    %218 = vmatpush1.xpose.msra.mxu0 0.0
    %219 = vmatprep.subr.mxu0 0.0
    %220 = vmatpush1.xpose.msra.mxu0 0.0
    %221 = vmatprep.subr.mxu0 0.0
    %222 = vmatpush1.xpose.msra.mxu0 0.0
    %223 = vmatprep.subr.mxu0 0.0
    %224 = vmatpush1.xpose.msra.mxu0 0.0
    %225 = vmatprep.subr.mxu0 0.0
    %226 = vmatpush1.xpose.msra.mxu0 0.0
    %227 = vmatprep.subr.mxu0 0.0
    %228 = vmatpush1.xpose.msra.mxu0 0.0
    %229 = vmatprep.subr.mxu0 0.0
    %230 = vmatpush1.xpose.msra.mxu0 0.0
    %231 = vmatprep.subr.mxu0 0.0
    %232 = vmatpush1.xpose.msra.mxu0 0.0
    %233 = vmatprep.subr.mxu0 0.0
    %234 = vmatpush1.xpose.msra.mxu0 0.0
    %235 = vmatprep.subr.mxu0 0.0
    %236 = vmatpush1.xpose.msra.mxu0 0.0
    %237 = vmatprep.subr.mxu0 0.0
    %238 = vmatpush1.xpose.msra.mxu0 0.0
    %239 = vmatprep.subr.mxu0 0.0
    %240 = vmatpush1.xpose.msra.mxu0 0.0
    %241 = vmatprep.subr.mxu0 0.0
    %242 = vmatpush1.xpose.msra.mxu0 0.0
    %243 = vmatprep.subr.mxu0 0.0
    %244 = vmatpush1.xpose.msra.mxu0 0.0
    %245 = vmatprep.subr.mxu0 0.0
    %246 = vmatpush1.xpose.msra.mxu0 0.0
    %247 = vmatprep.subr.mxu0 0.0
    %248 = vmatpush1.xpose.msra.mxu0 0.0
    %249 = vmatprep.subr.mxu0 0.0
    %250 = vmatpush1.xpose.msra.mxu0 0.0
    %251 = vmatprep.subr.mxu0 0.0
    %252 = vmatpush1.xpose.msra.mxu0 0.0
    %253 = vmatprep.subr.mxu0 0.0
    %254 = vmatpush1.xpose.msra.mxu0 0.0
    %255 = vmatprep.subr.mxu0 0.0
    %256 = vmatpush1.xpose.msra.mxu0 0.0
    %257 = vmatprep.subr.mxu0 0.0
    %258 = vmatpush1.xpose.msra.mxu0 0.0
    %259 = vmatprep.subr.mxu0 0.0
    %260 = vmatpush1.xpose.msra.mxu0 0.0
    %261 = vmatprep.subr.mxu0 0.0
    %262 = vmatpush1.xpose.msra.mxu0 0.0
    %263 = vmatprep.subr.mxu0 0.0
    %264 = vmatpush1.xpose.msra.mxu0 0.0
    %265 = vmatprep.subr.mxu0 0.0
    %266 = vmatpush1.xpose.msra.mxu0 0.0
    %267 = vmatprep.subr.mxu0 0.0
    %268 = vmatpush1.xpose.msra.mxu0 0.0
    %269 = vmatprep.subr.mxu0 0.0
    %270 = vmatpush1.xpose.msra.mxu0 0.0
    %271 = vmatprep.subr.mxu0 0.0
    %272 = vmatpush1.xpose.msra.mxu0 0.0
    %273 = vmatprep.subr.mxu0 0.0
    %274 = vmatpush1.xpose.msra.mxu0 0.0
    %275 = vmatprep.subr.mxu0 0.0
    %276 = vmatpush1.xpose.msra.mxu0 0.0
    %277 = vmatprep.subr.mxu0 0.0
    %278 = vmatpush1.xpose.msra.mxu0 0.0
    %279 = vmatprep.mubr.f32.mxu0 0.0
    %280 = vmatmul.mubr.f32.gmra.mrb[0].mxu0 %v211
    %v281 = vpop.f32.mrb[0].mxu0
    %v282 = vadd.f32 %v206, %v281
    %v283 = vpop.f32.mrb[0].mxu0
    %284 = vdwg.mxu0
    %v285 = vsel %vm210, %v282, -inf
    %286 = vmax.xlane.f32.xlu0 %v285
    %v287 = vpop.xlane.xlu0 %286
    %v288 = vsub.f32 %v282, %v287
    %v289 = vmul.f32 %v288, 1.442695
    %v290 = vpow.pop %v289
    %v291 = vsel %vm210, %v290, 0.0
    %292 = vadd.xlane.f32.xlu0 %v291
    %v293 = vpop.xlane.xlu0 %292
    %v294 = vrcp.pop %v293
    %v295 = vmul.f32 %v293, %v294
    %v296 = vsub.f32 2.0, %v295
    %v297 = vmul.f32 %v294, %v296
    %v298 = vmul.f32 %v290, %v297
    %299 = vrot.lane.b32.xlu0 %v188, 64
    %v300 = vpop.permute.xlu0 %299
    %v303 = vsel %vm210, %v298, 0
    %305 = vmatprep.subr.mxu0 0.0
    %306 = vmatpush1.msra.mxu0 %v300
    %307 = vmatprep.subr.mxu0 0.0
    %308 = vmatpush1.msra.mxu0 0.0
    %309 = vmatprep.subr.mxu0 0.0
    %310 = vmatpush1.msra.mxu0 0.0
    %311 = vmatprep.subr.mxu0 0.0
    %312 = vmatpush1.msra.mxu0 0.0
    %313 = vmatprep.subr.mxu0 0.0
    %314 = vmatpush1.msra.mxu0 0.0
    %315 = vmatprep.subr.mxu0 0.0
    %316 = vmatpush1.msra.mxu0 0.0
    %317 = vmatprep.subr.mxu0 0.0
    %318 = vmatpush1.msra.mxu0 0.0
    %319 = vmatprep.subr.mxu0 0.0
    %320 = vmatpush1.msra.mxu0 0.0
    %321 = vmatprep.subr.mxu0 0.0
    %322 = vmatpush1.msra.mxu0 0.0
    %323 = vmatprep.subr.mxu0 0.0
    %324 = vmatpush1.msra.mxu0 0.0
    %325 = vmatprep.subr.mxu0 0.0
    %326 = vmatpush1.msra.mxu0 0.0
    %327 = vmatprep.subr.mxu0 0.0
    %328 = vmatpush1.msra.mxu0 0.0
    %329 = vmatprep.subr.mxu0 0.0
    %330 = vmatpush1.msra.mxu0 0.0
    %331 = vmatprep.subr.mxu0 0.0
    %332 = vmatpush1.msra.mxu0 0.0
    %333 = vmatprep.subr.mxu0 0.0
    %334 = vmatpush1.msra.mxu0 0.0
    %335 = vmatprep.subr.mxu0 0.0
    %336 = vmatpush1.msra.mxu0 0.0
    %337 = vmatprep.subr.mxu0 0.0
    %338 = vmatpush1.msra.mxu0 0.0
    %339 = vmatprep.subr.mxu0 0.0
    %340 = vmatpush1.msra.mxu0 0.0
    %341 = vmatprep.subr.mxu0 0.0
    %342 = vmatpush1.msra.mxu0 0.0
    %343 = vmatprep.subr.mxu0 0.0
    %344 = vmatpush1.msra.mxu0 0.0
    %345 = vmatprep.subr.mxu0 0.0
    %346 = vmatpush1.msra.mxu0 0.0
    %347 = vmatprep.subr.mxu0 0.0
    %348 = vmatpush1.msra.mxu0 0.0
    %349 = vmatprep.subr.mxu0 0.0
    %350 = vmatpush1.msra.mxu0 0.0
    %351 = vmatprep.subr.mxu0 0.0
    %352 = vmatpush1.msra.mxu0 0.0
    %353 = vmatprep.subr.mxu0 0.0
    %354 = vmatpush1.msra.mxu0 0.0
    %355 = vmatprep.subr.mxu0 0.0
    %356 = vmatpush1.msra.mxu0 0.0
    %357 = vmatprep.subr.mxu0 0.0
    %358 = vmatpush1.msra.mxu0 0.0
    %359 = vmatprep.subr.mxu0 0.0
    %360 = vmatpush1.msra.mxu0 0.0
    %361 = vmatprep.subr.mxu0 0.0
    %362 = vmatpush1.msra.mxu0 0.0
    %363 = vmatprep.subr.mxu0 0.0
    %364 = vmatpush1.msra.mxu0 0.0
    %365 = vmatprep.subr.mxu0 0.0
    %366 = vmatpush1.msra.mxu0 0.0
    %367 = vmatprep.subr.mxu0 0.0
    %368 = vmatpush1.msra.mxu0 0.0
    %369 = vmatprep.mubr.f32.mxu0 0.0
    %370 = vmatmul.mubr.f32.gmra.mrb[0].mxu0 %v303
    %v371 = vpop.f32.mrb[0].mxu0
    %v372 = vadd.f32 0.0, %v371
    %v373 = vpop.f32.mrb[0].mxu0
    %374 = vdwg.mxu0
    %375 = vrot.lane.b32.xlu0 %v188, 120
    %v376 = vpop.permute.xlu0 %375
    %377 = vrot.lane.b32.xlu0 %v188, 88
    %v378 = vpop.permute.xlu0 %377
    %v379 = vsel %vm210, %v376, 0
    %v381 = vsel %vm210, %v378, 0
    %383 = vmatprep.subr.mxu0 0.0
    %384 = vmatpush1.xpose.msra.mxu0 %v381
    %385 = vmatprep.subr.mxu0 0.0
    %386 = vmatpush1.xpose.msra.mxu0 0.0
    %387 = vmatprep.subr.mxu0 0.0
    %388 = vmatpush1.xpose.msra.mxu0 0.0
    %389 = vmatprep.subr.mxu0 0.0
    %390 = vmatpush1.xpose.msra.mxu0 0.0
    %391 = vmatprep.subr.mxu0 0.0
    %392 = vmatpush1.xpose.msra.mxu0 0.0
    %393 = vmatprep.subr.mxu0 0.0
    %394 = vmatpush1.xpose.msra.mxu0 0.0
    %395 = vmatprep.subr.mxu0 0.0
    %396 = vmatpush1.xpose.msra.mxu0 0.0
    %397 = vmatprep.subr.mxu0 0.0
    %398 = vmatpush1.xpose.msra.mxu0 0.0
    %399 = vmatprep.subr.mxu0 0.0
    %400 = vmatpush1.xpose.msra.mxu0 0.0
    %401 = vmatprep.subr.mxu0 0.0
    %402 = vmatpush1.xpose.msra.mxu0 0.0
    %403 = vmatprep.subr.mxu0 0.0
    %404 = vmatpush1.xpose.msra.mxu0 0.0
    %405 = vmatprep.subr.mxu0 0.0
    %406 = vmatpush1.xpose.msra.mxu0 0.0
    %407 = vmatprep.subr.mxu0 0.0
    %408 = vmatpush1.xpose.msra.mxu0 0.0
    %409 = vmatprep.subr.mxu0 0.0
    %410 = vmatpush1.xpose.msra.mxu0 0.0
    %411 = vmatprep.subr.mxu0 0.0
    %412 = vmatpush1.xpose.msra.mxu0 0.0
    %413 = vmatprep.subr.mxu0 0.0
    %414 = vmatpush1.xpose.msra.mxu0 0.0
    %415 = vmatprep.subr.mxu0 0.0
    %416 = vmatpush1.xpose.msra.mxu0 0.0
    %417 = vmatprep.subr.mxu0 0.0
    %418 = vmatpush1.xpose.msra.mxu0 0.0
    %419 = vmatprep.subr.mxu0 0.0
    %420 = vmatpush1.xpose.msra.mxu0 0.0
    %421 = vmatprep.subr.mxu0 0.0
    %422 = vmatpush1.xpose.msra.mxu0 0.0
    %423 = vmatprep.subr.mxu0 0.0
    %424 = vmatpush1.xpose.msra.mxu0 0.0
    %425 = vmatprep.subr.mxu0 0.0
    %426 = vmatpush1.xpose.msra.mxu0 0.0
    %427 = vmatprep.subr.mxu0 0.0
    %428 = vmatpush1.xpose.msra.mxu0 0.0
    %429 = vmatprep.subr.mxu0 0.0
    %430 = vmatpush1.xpose.msra.mxu0 0.0
    %431 = vmatprep.subr.mxu0 0.0
    %432 = vmatpush1.xpose.msra.mxu0 0.0
    %433 = vmatprep.subr.mxu0 0.0
    %434 = vmatpush1.xpose.msra.mxu0 0.0
    %435 = vmatprep.subr.mxu0 0.0
    %436 = vmatpush1.xpose.msra.mxu0 0.0
    %437 = vmatprep.subr.mxu0 0.0
    %438 = vmatpush1.xpose.msra.mxu0 0.0
    %439 = vmatprep.subr.mxu0 0.0
    %440 = vmatpush1.xpose.msra.mxu0 0.0
    %441 = vmatprep.subr.mxu0 0.0
    %442 = vmatpush1.xpose.msra.mxu0 0.0
    %443 = vmatprep.subr.mxu0 0.0
    %444 = vmatpush1.xpose.msra.mxu0 0.0
    %445 = vmatprep.subr.mxu0 0.0
    %446 = vmatpush1.xpose.msra.mxu0 0.0
    %447 = vmatprep.mubr.f32.mxu0 0.0
    %448 = vmatmul.mubr.f32.gmra.mrb[0].mxu0 %v379
    %v449 = vpop.f32.mrb[0].mxu0
    %v450 = vadd.f32 %v206, %v449
    %v451 = vpop.f32.mrb[0].mxu0
    %452 = vdwg.mxu0
    %v453 = vsel %vm210, %v450, -inf
    %454 = vmax.xlane.f32.xlu0 %v453
    %v455 = vpop.xlane.xlu0 %454
    %v456 = vsub.f32 %v450, %v455
    %v457 = vmul.f32 %v456, 1.442695
    %v458 = vpow.pop %v457
    %v459 = vsel %vm210, %v458, 0.0
    %460 = vadd.xlane.f32.xlu0 %v459
    %v461 = vpop.xlane.xlu0 %460
    %v462 = vrcp.pop %v461
    %v463 = vmul.f32 %v461, %v462
    %v464 = vsub.f32 2.0, %v463
    %v465 = vmul.f32 %v462, %v464
    %v466 = vmul.f32 %v458, %v465
    %467 = vrot.lane.b32.xlu0 %v188, 56
    %v468 = vpop.permute.xlu0 %467
    %v471 = vsel %vm210, %v466, 0
    %473 = vmatprep.subr.mxu0 0.0
    %474 = vmatpush1.msra.mxu0 %v468
    %475 = vmatprep.subr.mxu0 0.0
    %476 = vmatpush1.msra.mxu0 0.0
    %477 = vmatprep.subr.mxu0 0.0
    %478 = vmatpush1.msra.mxu0 0.0
    %479 = vmatprep.subr.mxu0 0.0
    %480 = vmatpush1.msra.mxu0 0.0
    %481 = vmatprep.subr.mxu0 0.0
    %482 = vmatpush1.msra.mxu0 0.0
    %483 = vmatprep.subr.mxu0 0.0
    %484 = vmatpush1.msra.mxu0 0.0
    %485 = vmatprep.subr.mxu0 0.0
    %486 = vmatpush1.msra.mxu0 0.0
    %487 = vmatprep.subr.mxu0 0.0
    %488 = vmatpush1.msra.mxu0 0.0
    %489 = vmatprep.subr.mxu0 0.0
    %490 = vmatpush1.msra.mxu0 0.0
    %491 = vmatprep.subr.mxu0 0.0
    %492 = vmatpush1.msra.mxu0 0.0
    %493 = vmatprep.subr.mxu0 0.0
    %494 = vmatpush1.msra.mxu0 0.0
    %495 = vmatprep.subr.mxu0 0.0
    %496 = vmatpush1.msra.mxu0 0.0
    %497 = vmatprep.subr.mxu0 0.0
    %498 = vmatpush1.msra.mxu0 0.0
    %499 = vmatprep.subr.mxu0 0.0
    %500 = vmatpush1.msra.mxu0 0.0
    %501 = vmatprep.subr.mxu0 0.0
    %502 = vmatpush1.msra.mxu0 0.0
    %503 = vmatprep.subr.mxu0 0.0
    %504 = vmatpush1.msra.mxu0 0.0
    %505 = vmatprep.subr.mxu0 0.0
    %506 = vmatpush1.msra.mxu0 0.0
    %507 = vmatprep.subr.mxu0 0.0
    %508 = vmatpush1.msra.mxu0 0.0
    %509 = vmatprep.subr.mxu0 0.0
    %510 = vmatpush1.msra.mxu0 0.0
    %511 = vmatprep.subr.mxu0 0.0
    %512 = vmatpush1.msra.mxu0 0.0
    %513 = vmatprep.subr.mxu0 0.0
    %514 = vmatpush1.msra.mxu0 0.0
    %515 = vmatprep.subr.mxu0 0.0
    %516 = vmatpush1.msra.mxu0 0.0
    %517 = vmatprep.subr.mxu0 0.0
    %518 = vmatpush1.msra.mxu0 0.0
    %519 = vmatprep.subr.mxu0 0.0
    %520 = vmatpush1.msra.mxu0 0.0
    %521 = vmatprep.subr.mxu0 0.0
    %522 = vmatpush1.msra.mxu0 0.0
    %523 = vmatprep.subr.mxu0 0.0
    %524 = vmatpush1.msra.mxu0 0.0
    %525 = vmatprep.subr.mxu0 0.0
    %526 = vmatpush1.msra.mxu0 0.0
    %527 = vmatprep.subr.mxu0 0.0
    %528 = vmatpush1.msra.mxu0 0.0
    %529 = vmatprep.subr.mxu0 0.0
    %530 = vmatpush1.msra.mxu0 0.0
    %531 = vmatprep.subr.mxu0 0.0
    %532 = vmatpush1.msra.mxu0 0.0
    %533 = vmatprep.subr.mxu0 0.0
    %534 = vmatpush1.msra.mxu0 0.0
    %535 = vmatprep.subr.mxu0 0.0
    %536 = vmatpush1.msra.mxu0 0.0
    %537 = vmatprep.mubr.f32.mxu0 0.0
    %538 = vmatmul.mubr.f32.gmra.mrb[0].mxu0 %v471
    %v539 = vpop.f32.mrb[0].mxu0
    %v540 = vadd.f32 0.0, %v539
    %v541 = vpop.f32.mrb[0].mxu0
    %542 = vdwg.mxu0
    %v544 = vsel %vm210, %v540, 0
    %546 = vmatprep.subr.mxu0 0.0
    %547 = vmatpush1.msra.mxu0 %v200
    %548 = vmatprep.subr.mxu0 0.0
    %549 = vmatpush1.msra.mxu0 0.0
    %550 = vmatprep.subr.mxu0 0.0
    %551 = vmatpush1.msra.mxu0 0.0
    %552 = vmatprep.subr.mxu0 0.0
    %553 = vmatpush1.msra.mxu0 0.0
    %554 = vmatprep.subr.mxu0 0.0
    %555 = vmatpush1.msra.mxu0 0.0
    %556 = vmatprep.subr.mxu0 0.0
    %557 = vmatpush1.msra.mxu0 0.0
    %558 = vmatprep.subr.mxu0 0.0
    %559 = vmatpush1.msra.mxu0 0.0
    %560 = vmatprep.subr.mxu0 0.0
    %561 = vmatpush1.msra.mxu0 0.0
    %562 = vmatprep.subr.mxu0 0.0
    %563 = vmatpush1.msra.mxu0 0.0
    %564 = vmatprep.subr.mxu0 0.0
    %565 = vmatpush1.msra.mxu0 0.0
    %566 = vmatprep.subr.mxu0 0.0
    %567 = vmatpush1.msra.mxu0 0.0
    %568 = vmatprep.subr.mxu0 0.0
    %569 = vmatpush1.msra.mxu0 0.0
    %570 = vmatprep.subr.mxu0 0.0
    %571 = vmatpush1.msra.mxu0 0.0
    %572 = vmatprep.subr.mxu0 0.0
    %573 = vmatpush1.msra.mxu0 0.0
    %574 = vmatprep.subr.mxu0 0.0
    %575 = vmatpush1.msra.mxu0 0.0
    %576 = vmatprep.subr.mxu0 0.0
    %577 = vmatpush1.msra.mxu0 0.0
    %578 = vmatprep.subr.mxu0 0.0
    %579 = vmatpush1.msra.mxu0 0.0
    %580 = vmatprep.subr.mxu0 0.0
    %581 = vmatpush1.msra.mxu0 0.0
    %582 = vmatprep.subr.mxu0 0.0
    %583 = vmatpush1.msra.mxu0 0.0
    %584 = vmatprep.subr.mxu0 0.0
    %585 = vmatpush1.msra.mxu0 0.0
    %586 = vmatprep.subr.mxu0 0.0
    %587 = vmatpush1.msra.mxu0 0.0
    %588 = vmatprep.subr.mxu0 0.0
    %589 = vmatpush1.msra.mxu0 0.0
    %590 = vmatprep.subr.mxu0 0.0
    %591 = vmatpush1.msra.mxu0 0.0
    %592 = vmatprep.subr.mxu0 0.0
    %593 = vmatpush1.msra.mxu0 0.0
    %594 = vmatprep.subr.mxu0 0.0
    %595 = vmatpush1.msra.mxu0 0.0
    %596 = vmatprep.subr.mxu0 0.0
    %597 = vmatpush1.msra.mxu0 0.0
    %598 = vmatprep.subr.mxu0 0.0
    %599 = vmatpush1.msra.mxu0 0.0
    %600 = vmatprep.subr.mxu0 0.0
    %601 = vmatpush1.msra.mxu0 0.0
    %602 = vmatprep.subr.mxu0 0.0
    %603 = vmatpush1.msra.mxu0 0.0
    %604 = vmatprep.subr.mxu0 0.0
    %605 = vmatpush1.msra.mxu0 0.0
    %606 = vmatprep.subr.mxu0 0.0
    %607 = vmatpush1.msra.mxu0 0.0
    %608 = vmatprep.subr.mxu0 0.0
    %609 = vmatpush1.msra.mxu0 0.0
    %610 = vmatprep.mubr.f32.mxu0 0.0
    %611 = vmatmul.mubr.f32.gmra.mrb[0].mxu0 %v544
    %v612 = vpop.f32.mrb[0].mxu0
    %v613 = vadd.f32 0.0, %v612
    %v614 = vpop.f32.mrb[0].mxu0
    %615 = vdwg.mxu0
    %v617 = vsel %vm210, %v372, 0
    %619 = vmatprep.subr.mxu0 0.0
    %620 = vmatpush1.msra.mxu0 %v199
    %621 = vmatprep.subr.mxu0 0.0
    %622 = vmatpush1.msra.mxu0 0.0
    %623 = vmatprep.subr.mxu0 0.0
    %624 = vmatpush1.msra.mxu0 0.0
    %625 = vmatprep.subr.mxu0 0.0
    %626 = vmatpush1.msra.mxu0 0.0
    %627 = vmatprep.subr.mxu0 0.0
    %628 = vmatpush1.msra.mxu0 0.0
    %629 = vmatprep.subr.mxu0 0.0
    %630 = vmatpush1.msra.mxu0 0.0
    %631 = vmatprep.subr.mxu0 0.0
    %632 = vmatpush1.msra.mxu0 0.0
    %633 = vmatprep.subr.mxu0 0.0
    %634 = vmatpush1.msra.mxu0 0.0
    %635 = vmatprep.subr.mxu0 0.0
    %636 = vmatpush1.msra.mxu0 0.0
    %637 = vmatprep.subr.mxu0 0.0
    %638 = vmatpush1.msra.mxu0 0.0
    %639 = vmatprep.subr.mxu0 0.0
    %640 = vmatpush1.msra.mxu0 0.0
    %641 = vmatprep.subr.mxu0 0.0
    %642 = vmatpush1.msra.mxu0 0.0
    %643 = vmatprep.subr.mxu0 0.0
    %644 = vmatpush1.msra.mxu0 0.0
    %645 = vmatprep.subr.mxu0 0.0
    %646 = vmatpush1.msra.mxu0 0.0
    %647 = vmatprep.subr.mxu0 0.0
    %648 = vmatpush1.msra.mxu0 0.0
    %649 = vmatprep.subr.mxu0 0.0
    %650 = vmatpush1.msra.mxu0 0.0
    %651 = vmatprep.subr.mxu0 0.0
    %652 = vmatpush1.msra.mxu0 0.0
    %653 = vmatprep.subr.mxu0 0.0
    %654 = vmatpush1.msra.mxu0 0.0
    %655 = vmatprep.subr.mxu0 0.0
    %656 = vmatpush1.msra.mxu0 0.0
    %657 = vmatprep.subr.mxu0 0.0
    %658 = vmatpush1.msra.mxu0 0.0
    %659 = vmatprep.subr.mxu0 0.0
    %660 = vmatpush1.msra.mxu0 0.0
    %661 = vmatprep.subr.mxu0 0.0
    %662 = vmatpush1.msra.mxu0 0.0
    %663 = vmatprep.subr.mxu0 0.0
    %664 = vmatpush1.msra.mxu0 0.0
    %665 = vmatprep.subr.mxu0 0.0
    %666 = vmatpush1.msra.mxu0 0.0
    %667 = vmatprep.subr.mxu0 0.0
    %668 = vmatpush1.msra.mxu0 0.0
    %669 = vmatprep.subr.mxu0 0.0
    %670 = vmatpush1.msra.mxu0 0.0
    %671 = vmatprep.subr.mxu0 0.0
    %672 = vmatpush1.msra.mxu0 0.0
    %673 = vmatprep.subr.mxu0 0.0
    %674 = vmatpush1.msra.mxu0 0.0
    %675 = vmatprep.subr.mxu0 0.0
    %676 = vmatpush1.msra.mxu0 0.0
    %677 = vmatprep.subr.mxu0 0.0
    %678 = vmatpush1.msra.mxu0 0.0
    %679 = vmatprep.subr.mxu0 0.0
    %680 = vmatpush1.msra.mxu0 0.0
    %681 = vmatprep.subr.mxu0 0.0
    %682 = vmatpush1.msra.mxu0 0.0
    %683 = vmatprep.mubr.f32.mxu0 0.0
    %684 = vmatmul.mubr.f32.gmra.mrb[0].mxu0 %v617
    %v685 = vpop.f32.mrb[0].mxu0
    %v686 = vadd.f32 %v613, %v685
    %v687 = vpop.f32.mrb[0].mxu0
    %688 = vdwg.mxu0
    %689 = vrot.lane.b32.xlu0 %v188, 112
    %v690 = vpop.permute.xlu0 %689
    %691 = vrot.lane.b32.xlu0 %v188, 80
    %v692 = vpop.permute.xlu0 %691
    %v693 = vsel %vm210, %v690, 0
    %v695 = vsel %vm210, %v692, 0
    %697 = vmatprep.subr.mxu0 0.0
    %698 = vmatpush1.xpose.msra.mxu0 %v695
    %699 = vmatprep.subr.mxu0 0.0
    %700 = vmatpush1.xpose.msra.mxu0 0.0
    %701 = vmatprep.subr.mxu0 0.0
    %702 = vmatpush1.xpose.msra.mxu0 0.0
    %703 = vmatprep.subr.mxu0 0.0
    %704 = vmatpush1.xpose.msra.mxu0 0.0
    %705 = vmatprep.subr.mxu0 0.0
    %706 = vmatpush1.xpose.msra.mxu0 0.0
    %707 = vmatprep.subr.mxu0 0.0
    %708 = vmatpush1.xpose.msra.mxu0 0.0
    %709 = vmatprep.subr.mxu0 0.0
    %710 = vmatpush1.xpose.msra.mxu0 0.0
    %711 = vmatprep.subr.mxu0 0.0
    %712 = vmatpush1.xpose.msra.mxu0 0.0
    %713 = vmatprep.subr.mxu0 0.0
    %714 = vmatpush1.xpose.msra.mxu0 0.0
    %715 = vmatprep.subr.mxu0 0.0
    %716 = vmatpush1.xpose.msra.mxu0 0.0
    %717 = vmatprep.subr.mxu0 0.0
    %718 = vmatpush1.xpose.msra.mxu0 0.0
    %719 = vmatprep.subr.mxu0 0.0
    %720 = vmatpush1.xpose.msra.mxu0 0.0
    %721 = vmatprep.subr.mxu0 0.0
    %722 = vmatpush1.xpose.msra.mxu0 0.0
    %723 = vmatprep.subr.mxu0 0.0
    %724 = vmatpush1.xpose.msra.mxu0 0.0
    %725 = vmatprep.subr.mxu0 0.0
    %726 = vmatpush1.xpose.msra.mxu0 0.0
    %727 = vmatprep.subr.mxu0 0.0
    %728 = vmatpush1.xpose.msra.mxu0 0.0
    %729 = vmatprep.subr.mxu0 0.0
    %730 = vmatpush1.xpose.msra.mxu0 0.0
    %731 = vmatprep.subr.mxu0 0.0
    %732 = vmatpush1.xpose.msra.mxu0 0.0
    %733 = vmatprep.subr.mxu0 0.0
    %734 = vmatpush1.xpose.msra.mxu0 0.0
    %735 = vmatprep.subr.mxu0 0.0
    %736 = vmatpush1.xpose.msra.mxu0 0.0
    %737 = vmatprep.subr.mxu0 0.0
    %738 = vmatpush1.xpose.msra.mxu0 0.0
    %739 = vmatprep.subr.mxu0 0.0
    %740 = vmatpush1.xpose.msra.mxu0 0.0
    %741 = vmatprep.subr.mxu0 0.0
    %742 = vmatpush1.xpose.msra.mxu0 0.0
    %743 = vmatprep.subr.mxu0 0.0
    %744 = vmatpush1.xpose.msra.mxu0 0.0
    %745 = vmatprep.subr.mxu0 0.0
    %746 = vmatpush1.xpose.msra.mxu0 0.0
    %747 = vmatprep.subr.mxu0 0.0
    %748 = vmatpush1.xpose.msra.mxu0 0.0
    %749 = vmatprep.subr.mxu0 0.0
    %750 = vmatpush1.xpose.msra.mxu0 0.0
    %751 = vmatprep.subr.mxu0 0.0
    %752 = vmatpush1.xpose.msra.mxu0 0.0
    %753 = vmatprep.subr.mxu0 0.0
    %754 = vmatpush1.xpose.msra.mxu0 0.0
    %755 = vmatprep.subr.mxu0 0.0
    %756 = vmatpush1.xpose.msra.mxu0 0.0
    %757 = vmatprep.subr.mxu0 0.0
    %758 = vmatpush1.xpose.msra.mxu0 0.0
    %759 = vmatprep.subr.mxu0 0.0
    %760 = vmatpush1.xpose.msra.mxu0 0.0
    %761 = vmatprep.mubr.f32.mxu0 0.0
    %762 = vmatmul.mubr.f32.gmra.mrb[0].mxu0 %v693
    %v763 = vpop.f32.mrb[0].mxu0
    %v764 = vadd.f32 %v206, %v763
    %v765 = vpop.f32.mrb[0].mxu0
    %766 = vdwg.mxu0
    %v767 = vsel %vm210, %v764, -inf
    %768 = vmax.xlane.f32.xlu0 %v767
    %v769 = vpop.xlane.xlu0 %768
    %v770 = vsub.f32 %v764, %v769
    %v771 = vmul.f32 %v770, 1.442695
    %v772 = vpow.pop %v771
    %v773 = vsel %vm210, %v772, 0.0
    %774 = vadd.xlane.f32.xlu0 %v773
    %v775 = vpop.xlane.xlu0 %774
    %v776 = vrcp.pop %v775
    %v777 = vmul.f32 %v775, %v776
    %v778 = vsub.f32 2.0, %v777
    %v779 = vmul.f32 %v776, %v778
    %v780 = vmul.f32 %v772, %v779
    %781 = vrot.lane.b32.xlu0 %v188, 48
    %v782 = vpop.permute.xlu0 %781
    %v785 = vsel %vm210, %v780, 0
    %787 = vmatprep.subr.mxu0 0.0
    %788 = vmatpush1.msra.mxu0 %v782
    %789 = vmatprep.subr.mxu0 0.0
    %790 = vmatpush1.msra.mxu0 0.0
    %791 = vmatprep.subr.mxu0 0.0
    %792 = vmatpush1.msra.mxu0 0.0
    %793 = vmatprep.subr.mxu0 0.0
    %794 = vmatpush1.msra.mxu0 0.0
    %795 = vmatprep.subr.mxu0 0.0
    %796 = vmatpush1.msra.mxu0 0.0
    %797 = vmatprep.subr.mxu0 0.0
    %798 = vmatpush1.msra.mxu0 0.0
    %799 = vmatprep.subr.mxu0 0.0
    %800 = vmatpush1.msra.mxu0 0.0
    %801 = vmatprep.subr.mxu0 0.0
    %802 = vmatpush1.msra.mxu0 0.0
    %803 = vmatprep.subr.mxu0 0.0
    %804 = vmatpush1.msra.mxu0 0.0
    %805 = vmatprep.subr.mxu0 0.0
    %806 = vmatpush1.msra.mxu0 0.0
    %807 = vmatprep.subr.mxu0 0.0
    %808 = vmatpush1.msra.mxu0 0.0
    %809 = vmatprep.subr.mxu0 0.0
    %810 = vmatpush1.msra.mxu0 0.0
    %811 = vmatprep.subr.mxu0 0.0
    %812 = vmatpush1.msra.mxu0 0.0
    %813 = vmatprep.subr.mxu0 0.0
    %814 = vmatpush1.msra.mxu0 0.0
    %815 = vmatprep.subr.mxu0 0.0
    %816 = vmatpush1.msra.mxu0 0.0
    %817 = vmatprep.subr.mxu0 0.0
    %818 = vmatpush1.msra.mxu0 0.0
    %819 = vmatprep.subr.mxu0 0.0
    %820 = vmatpush1.msra.mxu0 0.0
    %821 = vmatprep.subr.mxu0 0.0
    %822 = vmatpush1.msra.mxu0 0.0
    %823 = vmatprep.subr.mxu0 0.0
    %824 = vmatpush1.msra.mxu0 0.0
    %825 = vmatprep.subr.mxu0 0.0
    %826 = vmatpush1.msra.mxu0 0.0
    %827 = vmatprep.subr.mxu0 0.0
    %828 = vmatpush1.msra.mxu0 0.0
    %829 = vmatprep.subr.mxu0 0.0
    %830 = vmatpush1.msra.mxu0 0.0
    %831 = vmatprep.subr.mxu0 0.0
    %832 = vmatpush1.msra.mxu0 0.0
    %833 = vmatprep.subr.mxu0 0.0
    %834 = vmatpush1.msra.mxu0 0.0
    %835 = vmatprep.subr.mxu0 0.0
    %836 = vmatpush1.msra.mxu0 0.0
    %837 = vmatprep.subr.mxu0 0.0
    %838 = vmatpush1.msra.mxu0 0.0
    %839 = vmatprep.subr.mxu0 0.0
    %840 = vmatpush1.msra.mxu0 0.0
    %841 = vmatprep.subr.mxu0 0.0
    %842 = vmatpush1.msra.mxu0 0.0
    %843 = vmatprep.subr.mxu0 0.0
    %844 = vmatpush1.msra.mxu0 0.0
    %845 = vmatprep.subr.mxu0 0.0
    %846 = vmatpush1.msra.mxu0 0.0
    %847 = vmatprep.subr.mxu0 0.0
    %848 = vmatpush1.msra.mxu0 0.0
    %849 = vmatprep.subr.mxu0 0.0
    %850 = vmatpush1.msra.mxu0 0.0
    %851 = vmatprep.mubr.f32.mxu0 0.0
    %852 = vmatmul.mubr.f32.gmra.mrb[0].mxu0 %v785
    %v853 = vpop.f32.mrb[0].mxu0
    %v854 = vadd.f32 0.0, %v853
    %v855 = vpop.f32.mrb[0].mxu0
    %856 = vdwg.mxu0
    %v858 = vsel %vm210, %v854, 0
    %860 = vmatprep.subr.mxu0 0.0
    %861 = vmatpush1.msra.mxu0 %v201
    %862 = vmatprep.subr.mxu0 0.0
    %863 = vmatpush1.msra.mxu0 0.0
    %864 = vmatprep.subr.mxu0 0.0
    %865 = vmatpush1.msra.mxu0 0.0
    %866 = vmatprep.subr.mxu0 0.0
    %867 = vmatpush1.msra.mxu0 0.0
    %868 = vmatprep.subr.mxu0 0.0
    %869 = vmatpush1.msra.mxu0 0.0
    %870 = vmatprep.subr.mxu0 0.0
    %871 = vmatpush1.msra.mxu0 0.0
    %872 = vmatprep.subr.mxu0 0.0
    %873 = vmatpush1.msra.mxu0 0.0
    %874 = vmatprep.subr.mxu0 0.0
    %875 = vmatpush1.msra.mxu0 0.0
    %876 = vmatprep.subr.mxu0 0.0
    %877 = vmatpush1.msra.mxu0 0.0
    %878 = vmatprep.subr.mxu0 0.0
    %879 = vmatpush1.msra.mxu0 0.0
    %880 = vmatprep.subr.mxu0 0.0
    %881 = vmatpush1.msra.mxu0 0.0
    %882 = vmatprep.subr.mxu0 0.0
    %883 = vmatpush1.msra.mxu0 0.0
    %884 = vmatprep.subr.mxu0 0.0
    %885 = vmatpush1.msra.mxu0 0.0
    %886 = vmatprep.subr.mxu0 0.0
    %887 = vmatpush1.msra.mxu0 0.0
    %888 = vmatprep.subr.mxu0 0.0
    %889 = vmatpush1.msra.mxu0 0.0
    %890 = vmatprep.subr.mxu0 0.0
    %891 = vmatpush1.msra.mxu0 0.0
    %892 = vmatprep.subr.mxu0 0.0
    %893 = vmatpush1.msra.mxu0 0.0
    %894 = vmatprep.subr.mxu0 0.0
    %895 = vmatpush1.msra.mxu0 0.0
    %896 = vmatprep.subr.mxu0 0.0
    %897 = vmatpush1.msra.mxu0 0.0
    %898 = vmatprep.subr.mxu0 0.0
    %899 = vmatpush1.msra.mxu0 0.0
    %900 = vmatprep.subr.mxu0 0.0
    %901 = vmatpush1.msra.mxu0 0.0
    %902 = vmatprep.subr.mxu0 0.0
    %903 = vmatpush1.msra.mxu0 0.0
    %904 = vmatprep.subr.mxu0 0.0
    %905 = vmatpush1.msra.mxu0 0.0
    %906 = vmatprep.subr.mxu0 0.0
    %907 = vmatpush1.msra.mxu0 0.0
    %908 = vmatprep.subr.mxu0 0.0
    %909 = vmatpush1.msra.mxu0 0.0
    %910 = vmatprep.subr.mxu0 0.0
    %911 = vmatpush1.msra.mxu0 0.0
    %912 = vmatprep.subr.mxu0 0.0
    %913 = vmatpush1.msra.mxu0 0.0
    %914 = vmatprep.subr.mxu0 0.0
    %915 = vmatpush1.msra.mxu0 0.0
    %916 = vmatprep.subr.mxu0 0.0
    %917 = vmatpush1.msra.mxu0 0.0
    %918 = vmatprep.subr.mxu0 0.0
    %919 = vmatpush1.msra.mxu0 0.0
    %920 = vmatprep.subr.mxu0 0.0
    %921 = vmatpush1.msra.mxu0 0.0
    %922 = vmatprep.subr.mxu0 0.0
    %923 = vmatpush1.msra.mxu0 0.0
    %924 = vmatprep.mubr.f32.mxu0 0.0
    %925 = vmatmul.mubr.f32.gmra.mrb[0].mxu0 %v858
    %v926 = vpop.f32.mrb[0].mxu0
    %v927 = vadd.f32 0.0, %v926
    %v928 = vpop.f32.mrb[0].mxu0
    %929 = vdwg.mxu0
    %v930 = vadd.f32 %v686, %v927
    %931 = vrot.lane.b32.xlu0 %v188, 104
    %v932 = vpop.permute.xlu0 %931
    %933 = vrot.lane.b32.xlu0 %v188, 72
    %v934 = vpop.permute.xlu0 %933
    %v935 = vsel %vm210, %v932, 0
    %v937 = vsel %vm210, %v934, 0
    %939 = vmatprep.subr.mxu0 0.0
    %940 = vmatpush1.xpose.msra.mxu0 %v937
    %941 = vmatprep.subr.mxu0 0.0
    %942 = vmatpush1.xpose.msra.mxu0 0.0
    %943 = vmatprep.subr.mxu0 0.0
    %944 = vmatpush1.xpose.msra.mxu0 0.0
    %945 = vmatprep.subr.mxu0 0.0
    %946 = vmatpush1.xpose.msra.mxu0 0.0
    %947 = vmatprep.subr.mxu0 0.0
    %948 = vmatpush1.xpose.msra.mxu0 0.0
    %949 = vmatprep.subr.mxu0 0.0
    %950 = vmatpush1.xpose.msra.mxu0 0.0
    %951 = vmatprep.subr.mxu0 0.0
    %952 = vmatpush1.xpose.msra.mxu0 0.0
    %953 = vmatprep.subr.mxu0 0.0
    %954 = vmatpush1.xpose.msra.mxu0 0.0
    %955 = vmatprep.subr.mxu0 0.0
    %956 = vmatpush1.xpose.msra.mxu0 0.0
    %957 = vmatprep.subr.mxu0 0.0
    %958 = vmatpush1.xpose.msra.mxu0 0.0
    %959 = vmatprep.subr.mxu0 0.0
    %960 = vmatpush1.xpose.msra.mxu0 0.0
    %961 = vmatprep.subr.mxu0 0.0
    %962 = vmatpush1.xpose.msra.mxu0 0.0
    %963 = vmatprep.subr.mxu0 0.0
    %964 = vmatpush1.xpose.msra.mxu0 0.0
    %965 = vmatprep.subr.mxu0 0.0
    %966 = vmatpush1.xpose.msra.mxu0 0.0
    %967 = vmatprep.subr.mxu0 0.0
    %968 = vmatpush1.xpose.msra.mxu0 0.0
    %969 = vmatprep.subr.mxu0 0.0
    %970 = vmatpush1.xpose.msra.mxu0 0.0
    %971 = vmatprep.subr.mxu0 0.0
    %972 = vmatpush1.xpose.msra.mxu0 0.0
    %973 = vmatprep.subr.mxu0 0.0
    %974 = vmatpush1.xpose.msra.mxu0 0.0
    %975 = vmatprep.subr.mxu0 0.0
    %976 = vmatpush1.xpose.msra.mxu0 0.0
    %977 = vmatprep.subr.mxu0 0.0
    %978 = vmatpush1.xpose.msra.mxu0 0.0
    %979 = vmatprep.subr.mxu0 0.0
    %980 = vmatpush1.xpose.msra.mxu0 0.0
    %981 = vmatprep.subr.mxu0 0.0
    %982 = vmatpush1.xpose.msra.mxu0 0.0
    %983 = vmatprep.subr.mxu0 0.0
    %984 = vmatpush1.xpose.msra.mxu0 0.0
    %985 = vmatprep.subr.mxu0 0.0
    %986 = vmatpush1.xpose.msra.mxu0 0.0
    %987 = vmatprep.subr.mxu0 0.0
    %988 = vmatpush1.xpose.msra.mxu0 0.0
    %989 = vmatprep.subr.mxu0 0.0
    %990 = vmatpush1.xpose.msra.mxu0 0.0
    %991 = vmatprep.subr.mxu0 0.0
    %992 = vmatpush1.xpose.msra.mxu0 0.0
    %993 = vmatprep.subr.mxu0 0.0
    %994 = vmatpush1.xpose.msra.mxu0 0.0
    %995 = vmatprep.subr.mxu0 0.0
    %996 = vmatpush1.xpose.msra.mxu0 0.0
    %997 = vmatprep.subr.mxu0 0.0
    %998 = vmatpush1.xpose.msra.mxu0 0.0
    %999 = vmatprep.subr.mxu0 0.0
    %1000 = vmatpush1.xpose.msra.mxu0 0.0
    %1001 = vmatprep.subr.mxu0 0.0
    %1002 = vmatpush1.xpose.msra.mxu0 0.0
    %1003 = vmatprep.mubr.f32.mxu0 0.0
    %1004 = vmatmul.mubr.f32.gmra.mrb[0].mxu0 %v935
    %v1005 = vpop.f32.mrb[0].mxu0
    %v1006 = vadd.f32 %v206, %v1005
    %v1007 = vpop.f32.mrb[0].mxu0
    %1008 = vdwg.mxu0
    %v1009 = vsel %vm210, %v1006, -inf
    %1010 = vmax.xlane.f32.xlu0 %v1009
    %v1011 = vpop.xlane.xlu0 %1010
    %v1012 = vsub.f32 %v1006, %v1011
    %v1013 = vmul.f32 %v1012, 1.442695
    %v1014 = vpow.pop %v1013
    %v1015 = vsel %vm210, %v1014, 0.0
    %1016 = vadd.xlane.f32.xlu0 %v1015
    %v1017 = vpop.xlane.xlu0 %1016
    %v1018 = vrcp.pop %v1017
    %v1019 = vmul.f32 %v1017, %v1018
    %v1020 = vsub.f32 2.0, %v1019
    %v1021 = vmul.f32 %v1018, %v1020
    %v1022 = vmul.f32 %v1014, %v1021
    %1023 = vrot.lane.b32.xlu0 %v188, 40
    %v1024 = vpop.permute.xlu0 %1023
    %v1027 = vsel %vm210, %v1022, 0
    %1029 = vmatprep.subr.mxu0 0.0
    %1030 = vmatpush1.msra.mxu0 %v1024
    %1031 = vmatprep.subr.mxu0 0.0
    %1032 = vmatpush1.msra.mxu0 0.0
    %1033 = vmatprep.subr.mxu0 0.0
    %1034 = vmatpush1.msra.mxu0 0.0
    %1035 = vmatprep.subr.mxu0 0.0
    %1036 = vmatpush1.msra.mxu0 0.0
    %1037 = vmatprep.subr.mxu0 0.0
    %1038 = vmatpush1.msra.mxu0 0.0
    %1039 = vmatprep.subr.mxu0 0.0
    %1040 = vmatpush1.msra.mxu0 0.0
    %1041 = vmatprep.subr.mxu0 0.0
    %1042 = vmatpush1.msra.mxu0 0.0
    %1043 = vmatprep.subr.mxu0 0.0
    %1044 = vmatpush1.msra.mxu0 0.0
    %1045 = vmatprep.subr.mxu0 0.0
    %1046 = vmatpush1.msra.mxu0 0.0
    %1047 = vmatprep.subr.mxu0 0.0
    %1048 = vmatpush1.msra.mxu0 0.0
    %1049 = vmatprep.subr.mxu0 0.0
    %1050 = vmatpush1.msra.mxu0 0.0
    %1051 = vmatprep.subr.mxu0 0.0
    %1052 = vmatpush1.msra.mxu0 0.0
    %1053 = vmatprep.subr.mxu0 0.0
    %1054 = vmatpush1.msra.mxu0 0.0
    %1055 = vmatprep.subr.mxu0 0.0
    %1056 = vmatpush1.msra.mxu0 0.0
    %1057 = vmatprep.subr.mxu0 0.0
    %1058 = vmatpush1.msra.mxu0 0.0
    %1059 = vmatprep.subr.mxu0 0.0
    %1060 = vmatpush1.msra.mxu0 0.0
    %1061 = vmatprep.subr.mxu0 0.0
    %1062 = vmatpush1.msra.mxu0 0.0
    %1063 = vmatprep.subr.mxu0 0.0
    %1064 = vmatpush1.msra.mxu0 0.0
    %1065 = vmatprep.subr.mxu0 0.0
    %1066 = vmatpush1.msra.mxu0 0.0
    %1067 = vmatprep.subr.mxu0 0.0
    %1068 = vmatpush1.msra.mxu0 0.0
    %1069 = vmatprep.subr.mxu0 0.0
    %1070 = vmatpush1.msra.mxu0 0.0
    %1071 = vmatprep.subr.mxu0 0.0
    %1072 = vmatpush1.msra.mxu0 0.0
    %1073 = vmatprep.subr.mxu0 0.0
    %1074 = vmatpush1.msra.mxu0 0.0
    %1075 = vmatprep.subr.mxu0 0.0
    %1076 = vmatpush1.msra.mxu0 0.0
    %1077 = vmatprep.subr.mxu0 0.0
    %1078 = vmatpush1.msra.mxu0 0.0
    %1079 = vmatprep.subr.mxu0 0.0
    %1080 = vmatpush1.msra.mxu0 0.0
    %1081 = vmatprep.subr.mxu0 0.0
    %1082 = vmatpush1.msra.mxu0 0.0
    %1083 = vmatprep.subr.mxu0 0.0
    %1084 = vmatpush1.msra.mxu0 0.0
    %1085 = vmatprep.subr.mxu0 0.0
    %1086 = vmatpush1.msra.mxu0 0.0
    %1087 = vmatprep.subr.mxu0 0.0
    %1088 = vmatpush1.msra.mxu0 0.0
    %1089 = vmatprep.subr.mxu0 0.0
    %1090 = vmatpush1.msra.mxu0 0.0
    %1091 = vmatprep.subr.mxu0 0.0
    %1092 = vmatpush1.msra.mxu0 0.0
    %1093 = vmatprep.mubr.f32.mxu0 0.0
    %1094 = vmatmul.mubr.f32.gmra.mrb[0].mxu0 %v1027
    %v1095 = vpop.f32.mrb[0].mxu0
    %v1096 = vadd.f32 0.0, %v1095
    %v1097 = vpop.f32.mrb[0].mxu0
    %1098 = vdwg.mxu0
    %v1100 = vsel %vm210, %v1096, 0
    %1102 = vmatprep.subr.mxu0 0.0
    %1103 = vmatpush1.msra.mxu0 %v202
    %1104 = vmatprep.subr.mxu0 0.0
    %1105 = vmatpush1.msra.mxu0 0.0
    %1106 = vmatprep.subr.mxu0 0.0
    %1107 = vmatpush1.msra.mxu0 0.0
    %1108 = vmatprep.subr.mxu0 0.0
    %1109 = vmatpush1.msra.mxu0 0.0
    %1110 = vmatprep.subr.mxu0 0.0
    %1111 = vmatpush1.msra.mxu0 0.0
    %1112 = vmatprep.subr.mxu0 0.0
    %1113 = vmatpush1.msra.mxu0 0.0
    %1114 = vmatprep.subr.mxu0 0.0
    %1115 = vmatpush1.msra.mxu0 0.0
    %1116 = vmatprep.subr.mxu0 0.0
    %1117 = vmatpush1.msra.mxu0 0.0
    %1118 = vmatprep.subr.mxu0 0.0
    %1119 = vmatpush1.msra.mxu0 0.0
    %1120 = vmatprep.subr.mxu0 0.0
    %1121 = vmatpush1.msra.mxu0 0.0
    %1122 = vmatprep.subr.mxu0 0.0
    %1123 = vmatpush1.msra.mxu0 0.0
    %1124 = vmatprep.subr.mxu0 0.0
    %1125 = vmatpush1.msra.mxu0 0.0
    %1126 = vmatprep.subr.mxu0 0.0
    %1127 = vmatpush1.msra.mxu0 0.0
    %1128 = vmatprep.subr.mxu0 0.0
    %1129 = vmatpush1.msra.mxu0 0.0
    %1130 = vmatprep.subr.mxu0 0.0
    %1131 = vmatpush1.msra.mxu0 0.0
    %1132 = vmatprep.subr.mxu0 0.0
    %1133 = vmatpush1.msra.mxu0 0.0
    %1134 = vmatprep.subr.mxu0 0.0
    %1135 = vmatpush1.msra.mxu0 0.0
    %1136 = vmatprep.subr.mxu0 0.0
    %1137 = vmatpush1.msra.mxu0 0.0
    %1138 = vmatprep.subr.mxu0 0.0
    %1139 = vmatpush1.msra.mxu0 0.0
    %1140 = vmatprep.subr.mxu0 0.0
    %1141 = vmatpush1.msra.mxu0 0.0
    %1142 = vmatprep.subr.mxu0 0.0
    %1143 = vmatpush1.msra.mxu0 0.0
    %1144 = vmatprep.subr.mxu0 0.0
    %1145 = vmatpush1.msra.mxu0 0.0
    %1146 = vmatprep.subr.mxu0 0.0
    %1147 = vmatpush1.msra.mxu0 0.0
    %1148 = vmatprep.subr.mxu0 0.0
    %1149 = vmatpush1.msra.mxu0 0.0
    %1150 = vmatprep.subr.mxu0 0.0
    %1151 = vmatpush1.msra.mxu0 0.0
    %1152 = vmatprep.subr.mxu0 0.0
    %1153 = vmatpush1.msra.mxu0 0.0
    %1154 = vmatprep.subr.mxu0 0.0
    %1155 = vmatpush1.msra.mxu0 0.0
    %1156 = vmatprep.subr.mxu0 0.0
    %1157 = vmatpush1.msra.mxu0 0.0
    %1158 = vmatprep.subr.mxu0 0.0
    %1159 = vmatpush1.msra.mxu0 0.0
    %1160 = vmatprep.subr.mxu0 0.0
    %1161 = vmatpush1.msra.mxu0 0.0
    %1162 = vmatprep.subr.mxu0 0.0
    %1163 = vmatpush1.msra.mxu0 0.0
    %1164 = vmatprep.subr.mxu0 0.0
    %1165 = vmatpush1.msra.mxu0 0.0
    %1166 = vmatprep.mubr.f32.mxu0 0.0
    %1167 = vmatmul.mubr.f32.gmra.mrb[0].mxu0 %v1100
    %v1168 = vpop.f32.mrb[0].mxu0
    %v1169 = vadd.f32 0.0, %v1168
    %v1170 = vpop.f32.mrb[0].mxu0
    %1171 = vdwg.mxu0
    %v1172 = vadd.f32 %v930, %v1169
    %1173 = vst.msk [vmem:[#allocation2] sm:$0xff] %vm50, %v1172
    %v1174 = vlaneseq
    %v1175 = vshrl.u32 %v1174, 7
    %v1176 = vsub.s32 1, %v1175
    %v1177 = vrot.slane %v198, %v1176
    %1179 = vrot.lane.b32.xlu0 %v193, 96
    %v1180 = vpop.permute.xlu0 %1179
    %v1181 = vsel %vm210, %v193, 0
    %v1183 = vsel %vm210, %v1180, 0
    %1185 = vmatprep.subr.mxu0 0.0
    %1186 = vmatpush1.xpose.msra.mxu0 %v1183
    %1187 = vmatprep.subr.mxu0 0.0
    %1188 = vmatpush1.xpose.msra.mxu0 0.0
    %1189 = vmatprep.subr.mxu0 0.0
    %1190 = vmatpush1.xpose.msra.mxu0 0.0
    %1191 = vmatprep.subr.mxu0 0.0
    %1192 = vmatpush1.xpose.msra.mxu0 0.0
    %1193 = vmatprep.subr.mxu0 0.0
    %1194 = vmatpush1.xpose.msra.mxu0 0.0
    %1195 = vmatprep.subr.mxu0 0.0
    %1196 = vmatpush1.xpose.msra.mxu0 0.0
    %1197 = vmatprep.subr.mxu0 0.0
    %1198 = vmatpush1.xpose.msra.mxu0 0.0
    %1199 = vmatprep.subr.mxu0 0.0
    %1200 = vmatpush1.xpose.msra.mxu0 0.0
    %1201 = vmatprep.subr.mxu0 0.0
    %1202 = vmatpush1.xpose.msra.mxu0 0.0
    %1203 = vmatprep.subr.mxu0 0.0
    %1204 = vmatpush1.xpose.msra.mxu0 0.0
    %1205 = vmatprep.subr.mxu0 0.0
    %1206 = vmatpush1.xpose.msra.mxu0 0.0
    %1207 = vmatprep.subr.mxu0 0.0
    %1208 = vmatpush1.xpose.msra.mxu0 0.0
    %1209 = vmatprep.subr.mxu0 0.0
    %1210 = vmatpush1.xpose.msra.mxu0 0.0
    %1211 = vmatprep.subr.mxu0 0.0
    %1212 = vmatpush1.xpose.msra.mxu0 0.0
    %1213 = vmatprep.subr.mxu0 0.0
    %1214 = vmatpush1.xpose.msra.mxu0 0.0
    %1215 = vmatprep.subr.mxu0 0.0
    %1216 = vmatpush1.xpose.msra.mxu0 0.0
    %1217 = vmatprep.subr.mxu0 0.0
    %1218 = vmatpush1.xpose.msra.mxu0 0.0
    %1219 = vmatprep.subr.mxu0 0.0
    %1220 = vmatpush1.xpose.msra.mxu0 0.0
    %1221 = vmatprep.subr.mxu0 0.0
    %1222 = vmatpush1.xpose.msra.mxu0 0.0
    %1223 = vmatprep.subr.mxu0 0.0
    %1224 = vmatpush1.xpose.msra.mxu0 0.0
    %1225 = vmatprep.subr.mxu0 0.0
    %1226 = vmatpush1.xpose.msra.mxu0 0.0
    %1227 = vmatprep.subr.mxu0 0.0
    %1228 = vmatpush1.xpose.msra.mxu0 0.0
    %1229 = vmatprep.subr.mxu0 0.0
    %1230 = vmatpush1.xpose.msra.mxu0 0.0
    %1231 = vmatprep.subr.mxu0 0.0
    %1232 = vmatpush1.xpose.msra.mxu0 0.0
    %1233 = vmatprep.subr.mxu0 0.0
    %1234 = vmatpush1.xpose.msra.mxu0 0.0
    %1235 = vmatprep.subr.mxu0 0.0
    %1236 = vmatpush1.xpose.msra.mxu0 0.0
    %1237 = vmatprep.subr.mxu0 0.0
    %1238 = vmatpush1.xpose.msra.mxu0 0.0
    %1239 = vmatprep.subr.mxu0 0.0
    %1240 = vmatpush1.xpose.msra.mxu0 0.0
    %1241 = vmatprep.subr.mxu0 0.0
    %1242 = vmatpush1.xpose.msra.mxu0 0.0
    %1243 = vmatprep.subr.mxu0 0.0
    %1244 = vmatpush1.xpose.msra.mxu0 0.0
    %1245 = vmatprep.subr.mxu0 0.0
    %1246 = vmatpush1.xpose.msra.mxu0 0.0
    %1247 = vmatprep.subr.mxu0 0.0
    %1248 = vmatpush1.xpose.msra.mxu0 0.0
    %1249 = vmatprep.mubr.f32.mxu0 0.0
    %1250 = vmatmul.mubr.f32.gmra.mrb[0].mxu0 %v1181
    %v1251 = vpop.f32.mrb[0].mxu0
    %v1252 = vadd.f32 %v1177, %v1251
    %v1253 = vpop.f32.mrb[0].mxu0
    %1254 = vdwg.mxu0
    %v1255 = vsel %vm210, %v1252, -inf
    %1256 = vmax.xlane.f32.xlu0 %v1255
    %v1257 = vpop.xlane.xlu0 %1256
    %v1258 = vsub.f32 %v1252, %v1257
    %v1259 = vmul.f32 %v1258, 1.442695
    %v1260 = vpow.pop %v1259
    %v1261 = vsel %vm210, %v1260, 0.0
    %1262 = vadd.xlane.f32.xlu0 %v1261
    %v1263 = vpop.xlane.xlu0 %1262
    %v1264 = vrcp.pop %v1263
    %v1265 = vmul.f32 %v1263, %v1264
    %v1266 = vsub.f32 2.0, %v1265
    %v1267 = vmul.f32 %v1264, %v1266
    %v1268 = vmul.f32 %v1260, %v1267
    %1269 = vrot.lane.b32.xlu0 %v193, 64
    %v1270 = vpop.permute.xlu0 %1269
    %v1273 = vsel %vm210, %v1268, 0
    %1275 = vmatprep.subr.mxu0 0.0
    %1276 = vmatpush1.msra.mxu0 %v1270
    %1277 = vmatprep.subr.mxu0 0.0
    %1278 = vmatpush1.msra.mxu0 0.0
    %1279 = vmatprep.subr.mxu0 0.0
    %1280 = vmatpush1.msra.mxu0 0.0
    %1281 = vmatprep.subr.mxu0 0.0
    %1282 = vmatpush1.msra.mxu0 0.0
    %1283 = vmatprep.subr.mxu0 0.0
    %1284 = vmatpush1.msra.mxu0 0.0
    %1285 = vmatprep.subr.mxu0 0.0
    %1286 = vmatpush1.msra.mxu0 0.0
    %1287 = vmatprep.subr.mxu0 0.0
    %1288 = vmatpush1.msra.mxu0 0.0
    %1289 = vmatprep.subr.mxu0 0.0
    %1290 = vmatpush1.msra.mxu0 0.0
    %1291 = vmatprep.subr.mxu0 0.0
    %1292 = vmatpush1.msra.mxu0 0.0
    %1293 = vmatprep.subr.mxu0 0.0
    %1294 = vmatpush1.msra.mxu0 0.0
    %1295 = vmatprep.subr.mxu0 0.0
    %1296 = vmatpush1.msra.mxu0 0.0
    %1297 = vmatprep.subr.mxu0 0.0
    %1298 = vmatpush1.msra.mxu0 0.0
    %1299 = vmatprep.subr.mxu0 0.0
    %1300 = vmatpush1.msra.mxu0 0.0
    %1301 = vmatprep.subr.mxu0 0.0
    %1302 = vmatpush1.msra.mxu0 0.0
    %1303 = vmatprep.subr.mxu0 0.0
    %1304 = vmatpush1.msra.mxu0 0.0
    %1305 = vmatprep.subr.mxu0 0.0
    %1306 = vmatpush1.msra.mxu0 0.0
    %1307 = vmatprep.subr.mxu0 0.0
    %1308 = vmatpush1.msra.mxu0 0.0
    %1309 = vmatprep.subr.mxu0 0.0
    %1310 = vmatpush1.msra.mxu0 0.0
    %1311 = vmatprep.subr.mxu0 0.0
    %1312 = vmatpush1.msra.mxu0 0.0
    %1313 = vmatprep.subr.mxu0 0.0
    %1314 = vmatpush1.msra.mxu0 0.0
    %1315 = vmatprep.subr.mxu0 0.0
    %1316 = vmatpush1.msra.mxu0 0.0
    %1317 = vmatprep.subr.mxu0 0.0
    %1318 = vmatpush1.msra.mxu0 0.0
    %1319 = vmatprep.subr.mxu0 0.0
    %1320 = vmatpush1.msra.mxu0 0.0
    %1321 = vmatprep.subr.mxu0 0.0
    %1322 = vmatpush1.msra.mxu0 0.0
    %1323 = vmatprep.subr.mxu0 0.0
    %1324 = vmatpush1.msra.mxu0 0.0
    %1325 = vmatprep.subr.mxu0 0.0
    %1326 = vmatpush1.msra.mxu0 0.0
    %1327 = vmatprep.subr.mxu0 0.0
    %1328 = vmatpush1.msra.mxu0 0.0
    %1329 = vmatprep.subr.mxu0 0.0
    %1330 = vmatpush1.msra.mxu0 0.0
    %1331 = vmatprep.subr.mxu0 0.0
    %1332 = vmatpush1.msra.mxu0 0.0
    %1333 = vmatprep.subr.mxu0 0.0
    %1334 = vmatpush1.msra.mxu0 0.0
    %1335 = vmatprep.subr.mxu0 0.0
    %1336 = vmatpush1.msra.mxu0 0.0
    %1337 = vmatprep.subr.mxu0 0.0
    %1338 = vmatpush1.msra.mxu0 0.0
    %1339 = vmatprep.mubr.f32.mxu0 0.0
    %1340 = vmatmul.mubr.f32.gmra.mrb[0].mxu0 %v1273
    %v1341 = vpop.f32.mrb[0].mxu0
    %v1342 = vadd.f32 0.0, %v1341
    %v1343 = vpop.f32.mrb[0].mxu0
    %1344 = vdwg.mxu0
    %1345 = vrot.lane.b32.xlu0 %v193, 120
    %v1346 = vpop.permute.xlu0 %1345
    %1347 = vrot.lane.b32.xlu0 %v193, 88
    %v1348 = vpop.permute.xlu0 %1347
    %v1349 = vsel %vm210, %v1346, 0
    %v1351 = vsel %vm210, %v1348, 0
    %1353 = vmatprep.subr.mxu0 0.0
    %1354 = vmatpush1.xpose.msra.mxu0 %v1351
    %1355 = vmatprep.subr.mxu0 0.0
    %1356 = vmatpush1.xpose.msra.mxu0 0.0
    %1357 = vmatprep.subr.mxu0 0.0
    %1358 = vmatpush1.xpose.msra.mxu0 0.0
    %1359 = vmatprep.subr.mxu0 0.0
    %1360 = vmatpush1.xpose.msra.mxu0 0.0
    %1361 = vmatprep.subr.mxu0 0.0
    %1362 = vmatpush1.xpose.msra.mxu0 0.0
    %1363 = vmatprep.subr.mxu0 0.0
    %1364 = vmatpush1.xpose.msra.mxu0 0.0
    %1365 = vmatprep.subr.mxu0 0.0
    %1366 = vmatpush1.xpose.msra.mxu0 0.0
    %1367 = vmatprep.subr.mxu0 0.0
    %1368 = vmatpush1.xpose.msra.mxu0 0.0
    %1369 = vmatprep.subr.mxu0 0.0
    %1370 = vmatpush1.xpose.msra.mxu0 0.0
    %1371 = vmatprep.subr.mxu0 0.0
    %1372 = vmatpush1.xpose.msra.mxu0 0.0
    %1373 = vmatprep.subr.mxu0 0.0
    %1374 = vmatpush1.xpose.msra.mxu0 0.0
    %1375 = vmatprep.subr.mxu0 0.0
    %1376 = vmatpush1.xpose.msra.mxu0 0.0
    %1377 = vmatprep.subr.mxu0 0.0
    %1378 = vmatpush1.xpose.msra.mxu0 0.0
    %1379 = vmatprep.subr.mxu0 0.0
    %1380 = vmatpush1.xpose.msra.mxu0 0.0
    %1381 = vmatprep.subr.mxu0 0.0
    %1382 = vmatpush1.xpose.msra.mxu0 0.0
    %1383 = vmatprep.subr.mxu0 0.0
    %1384 = vmatpush1.xpose.msra.mxu0 0.0
    %1385 = vmatprep.subr.mxu0 0.0
    %1386 = vmatpush1.xpose.msra.mxu0 0.0
    %1387 = vmatprep.subr.mxu0 0.0
    %1388 = vmatpush1.xpose.msra.mxu0 0.0
    %1389 = vmatprep.subr.mxu0 0.0
    %1390 = vmatpush1.xpose.msra.mxu0 0.0
    %1391 = vmatprep.subr.mxu0 0.0
    %1392 = vmatpush1.xpose.msra.mxu0 0.0
    %1393 = vmatprep.subr.mxu0 0.0
    %1394 = vmatpush1.xpose.msra.mxu0 0.0
    %1395 = vmatprep.subr.mxu0 0.0
    %1396 = vmatpush1.xpose.msra.mxu0 0.0
    %1397 = vmatprep.subr.mxu0 0.0
    %1398 = vmatpush1.xpose.msra.mxu0 0.0
    %1399 = vmatprep.subr.mxu0 0.0
    %1400 = vmatpush1.xpose.msra.mxu0 0.0
    %1401 = vmatprep.subr.mxu0 0.0
    %1402 = vmatpush1.xpose.msra.mxu0 0.0
    %1403 = vmatprep.subr.mxu0 0.0
    %1404 = vmatpush1.xpose.msra.mxu0 0.0
    %1405 = vmatprep.subr.mxu0 0.0
    %1406 = vmatpush1.xpose.msra.mxu0 0.0
    %1407 = vmatprep.subr.mxu0 0.0
    %1408 = vmatpush1.xpose.msra.mxu0 0.0
    %1409 = vmatprep.subr.mxu0 0.0
    %1410 = vmatpush1.xpose.msra.mxu0 0.0
    %1411 = vmatprep.subr.mxu0 0.0
    %1412 = vmatpush1.xpose.msra.mxu0 0.0
    %1413 = vmatprep.subr.mxu0 0.0
    %1414 = vmatpush1.xpose.msra.mxu0 0.0
    %1415 = vmatprep.subr.mxu0 0.0
    %1416 = vmatpush1.xpose.msra.mxu0 0.0
    %1417 = vmatprep.mubr.f32.mxu0 0.0
    %1418 = vmatmul.mubr.f32.gmra.mrb[0].mxu0 %v1349
    %v1419 = vpop.f32.mrb[0].mxu0
    %v1420 = vadd.f32 %v1177, %v1419
    %v1421 = vpop.f32.mrb[0].mxu0
    %1422 = vdwg.mxu0
    %v1423 = vsel %vm210, %v1420, -inf
    %1424 = vmax.xlane.f32.xlu0 %v1423
    %v1425 = vpop.xlane.xlu0 %1424
    %v1426 = vsub.f32 %v1420, %v1425
    %v1427 = vmul.f32 %v1426, 1.442695
    %v1428 = vpow.pop %v1427
    %v1429 = vsel %vm210, %v1428, 0.0
    %1430 = vadd.xlane.f32.xlu0 %v1429
    %v1431 = vpop.xlane.xlu0 %1430
    %v1432 = vrcp.pop %v1431
    %v1433 = vmul.f32 %v1431, %v1432
    %v1434 = vsub.f32 2.0, %v1433
    %v1435 = vmul.f32 %v1432, %v1434
    %v1436 = vmul.f32 %v1428, %v1435
    %1437 = vrot.lane.b32.xlu0 %v193, 56
    %v1438 = vpop.permute.xlu0 %1437
    %v1441 = vsel %vm210, %v1436, 0
    %1443 = vmatprep.subr.mxu0 0.0
    %1444 = vmatpush1.msra.mxu0 %v1438
    %1445 = vmatprep.subr.mxu0 0.0
    %1446 = vmatpush1.msra.mxu0 0.0
    %1447 = vmatprep.subr.mxu0 0.0
    %1448 = vmatpush1.msra.mxu0 0.0
    %1449 = vmatprep.subr.mxu0 0.0
    %1450 = vmatpush1.msra.mxu0 0.0
    %1451 = vmatprep.subr.mxu0 0.0
    %1452 = vmatpush1.msra.mxu0 0.0
    %1453 = vmatprep.subr.mxu0 0.0
    %1454 = vmatpush1.msra.mxu0 0.0
    %1455 = vmatprep.subr.mxu0 0.0
    %1456 = vmatpush1.msra.mxu0 0.0
    %1457 = vmatprep.subr.mxu0 0.0
    %1458 = vmatpush1.msra.mxu0 0.0
    %1459 = vmatprep.subr.mxu0 0.0
    %1460 = vmatpush1.msra.mxu0 0.0
    %1461 = vmatprep.subr.mxu0 0.0
    %1462 = vmatpush1.msra.mxu0 0.0
    %1463 = vmatprep.subr.mxu0 0.0
    %1464 = vmatpush1.msra.mxu0 0.0
    %1465 = vmatprep.subr.mxu0 0.0
    %1466 = vmatpush1.msra.mxu0 0.0
    %1467 = vmatprep.subr.mxu0 0.0
    %1468 = vmatpush1.msra.mxu0 0.0
    %1469 = vmatprep.subr.mxu0 0.0
    %1470 = vmatpush1.msra.mxu0 0.0
    %1471 = vmatprep.subr.mxu0 0.0
    %1472 = vmatpush1.msra.mxu0 0.0
    %1473 = vmatprep.subr.mxu0 0.0
    %1474 = vmatpush1.msra.mxu0 0.0
    %1475 = vmatprep.subr.mxu0 0.0
    %1476 = vmatpush1.msra.mxu0 0.0
    %1477 = vmatprep.subr.mxu0 0.0
    %1478 = vmatpush1.msra.mxu0 0.0
    %1479 = vmatprep.subr.mxu0 0.0
    %1480 = vmatpush1.msra.mxu0 0.0
    %1481 = vmatprep.subr.mxu0 0.0
    %1482 = vmatpush1.msra.mxu0 0.0
    %1483 = vmatprep.subr.mxu0 0.0
    %1484 = vmatpush1.msra.mxu0 0.0
    %1485 = vmatprep.subr.mxu0 0.0
    %1486 = vmatpush1.msra.mxu0 0.0
    %1487 = vmatprep.subr.mxu0 0.0
    %1488 = vmatpush1.msra.mxu0 0.0
    %1489 = vmatprep.subr.mxu0 0.0
    %1490 = vmatpush1.msra.mxu0 0.0
    %1491 = vmatprep.subr.mxu0 0.0
    %1492 = vmatpush1.msra.mxu0 0.0
    %1493 = vmatprep.subr.mxu0 0.0
    %1494 = vmatpush1.msra.mxu0 0.0
    %1495 = vmatprep.subr.mxu0 0.0
    %1496 = vmatpush1.msra.mxu0 0.0
    %1497 = vmatprep.subr.mxu0 0.0
    %1498 = vmatpush1.msra.mxu0 0.0
    %1499 = vmatprep.subr.mxu0 0.0
    %1500 = vmatpush1.msra.mxu0 0.0
    %1501 = vmatprep.subr.mxu0 0.0
    %1502 = vmatpush1.msra.mxu0 0.0
    %1503 = vmatprep.subr.mxu0 0.0
    %1504 = vmatpush1.msra.mxu0 0.0
    %1505 = vmatprep.subr.mxu0 0.0
    %1506 = vmatpush1.msra.mxu0 0.0
    %1507 = vmatprep.mubr.f32.mxu0 0.0
    %1508 = vmatmul.mubr.f32.gmra.mrb[0].mxu0 %v1441
    %v1509 = vpop.f32.mrb[0].mxu0
    %v1510 = vadd.f32 0.0, %v1509
    %v1511 = vpop.f32.mrb[0].mxu0
    %1512 = vdwg.mxu0
    %v1514 = vsel %vm210, %v1510, 0
    %1516 = vmatprep.subr.mxu0 0.0
    %1517 = vmatpush1.msra.mxu0 %v200
    %1518 = vmatprep.subr.mxu0 0.0
    %1519 = vmatpush1.msra.mxu0 0.0
    %1520 = vmatprep.subr.mxu0 0.0
    %1521 = vmatpush1.msra.mxu0 0.0
    %1522 = vmatprep.subr.mxu0 0.0
    %1523 = vmatpush1.msra.mxu0 0.0
    %1524 = vmatprep.subr.mxu0 0.0
    %1525 = vmatpush1.msra.mxu0 0.0
    %1526 = vmatprep.subr.mxu0 0.0
    %1527 = vmatpush1.msra.mxu0 0.0
    %1528 = vmatprep.subr.mxu0 0.0
    %1529 = vmatpush1.msra.mxu0 0.0
    %1530 = vmatprep.subr.mxu0 0.0
    %1531 = vmatpush1.msra.mxu0 0.0
    %1532 = vmatprep.subr.mxu0 0.0
    %1533 = vmatpush1.msra.mxu0 0.0
    %1534 = vmatprep.subr.mxu0 0.0
    %1535 = vmatpush1.msra.mxu0 0.0
    %1536 = vmatprep.subr.mxu0 0.0
    %1537 = vmatpush1.msra.mxu0 0.0
    %1538 = vmatprep.subr.mxu0 0.0
    %1539 = vmatpush1.msra.mxu0 0.0
    %1540 = vmatprep.subr.mxu0 0.0
    %1541 = vmatpush1.msra.mxu0 0.0
    %1542 = vmatprep.subr.mxu0 0.0
    %1543 = vmatpush1.msra.mxu0 0.0
    %1544 = vmatprep.subr.mxu0 0.0
    %1545 = vmatpush1.msra.mxu0 0.0
    %1546 = vmatprep.subr.mxu0 0.0
    %1547 = vmatpush1.msra.mxu0 0.0
    %1548 = vmatprep.subr.mxu0 0.0
    %1549 = vmatpush1.msra.mxu0 0.0
    %1550 = vmatprep.subr.mxu0 0.0
    %1551 = vmatpush1.msra.mxu0 0.0
    %1552 = vmatprep.subr.mxu0 0.0
    %1553 = vmatpush1.msra.mxu0 0.0
    %1554 = vmatprep.subr.mxu0 0.0
    %1555 = vmatpush1.msra.mxu0 0.0
    %1556 = vmatprep.subr.mxu0 0.0
    %1557 = vmatpush1.msra.mxu0 0.0
    %1558 = vmatprep.subr.mxu0 0.0
    %1559 = vmatpush1.msra.mxu0 0.0
    %1560 = vmatprep.subr.mxu0 0.0
    %1561 = vmatpush1.msra.mxu0 0.0
    %1562 = vmatprep.subr.mxu0 0.0
    %1563 = vmatpush1.msra.mxu0 0.0
    %1564 = vmatprep.subr.mxu0 0.0
    %1565 = vmatpush1.msra.mxu0 0.0
    %1566 = vmatprep.subr.mxu0 0.0
    %1567 = vmatpush1.msra.mxu0 0.0
    %1568 = vmatprep.subr.mxu0 0.0
    %1569 = vmatpush1.msra.mxu0 0.0
    %1570 = vmatprep.subr.mxu0 0.0
    %1571 = vmatpush1.msra.mxu0 0.0
    %1572 = vmatprep.subr.mxu0 0.0
    %1573 = vmatpush1.msra.mxu0 0.0
    %1574 = vmatprep.subr.mxu0 0.0
    %1575 = vmatpush1.msra.mxu0 0.0
    %1576 = vmatprep.subr.mxu0 0.0
    %1577 = vmatpush1.msra.mxu0 0.0
    %1578 = vmatprep.subr.mxu0 0.0
    %1579 = vmatpush1.msra.mxu0 0.0
    %1580 = vmatprep.mubr.f32.mxu0 0.0
    %1581 = vmatmul.mubr.f32.gmra.mrb[0].mxu0 %v1514
    %v1582 = vpop.f32.mrb[0].mxu0
    %v1583 = vadd.f32 0.0, %v1582
    %v1584 = vpop.f32.mrb[0].mxu0
    %1585 = vdwg.mxu0
    %v1587 = vsel %vm210, %v1342, 0
    %1589 = vmatprep.subr.mxu0 0.0
    %1590 = vmatpush1.msra.mxu0 %v199
    %1591 = vmatprep.subr.mxu0 0.0
    %1592 = vmatpush1.msra.mxu0 0.0
    %1593 = vmatprep.subr.mxu0 0.0
    %1594 = vmatpush1.msra.mxu0 0.0
    %1595 = vmatprep.subr.mxu0 0.0
    %1596 = vmatpush1.msra.mxu0 0.0
    %1597 = vmatprep.subr.mxu0 0.0
    %1598 = vmatpush1.msra.mxu0 0.0
    %1599 = vmatprep.subr.mxu0 0.0
    %1600 = vmatpush1.msra.mxu0 0.0
    %1601 = vmatprep.subr.mxu0 0.0
    %1602 = vmatpush1.msra.mxu0 0.0
    %1603 = vmatprep.subr.mxu0 0.0
    %1604 = vmatpush1.msra.mxu0 0.0
    %1605 = vmatprep.subr.mxu0 0.0
    %1606 = vmatpush1.msra.mxu0 0.0
    %1607 = vmatprep.subr.mxu0 0.0
    %1608 = vmatpush1.msra.mxu0 0.0
    %1609 = vmatprep.subr.mxu0 0.0
    %1610 = vmatpush1.msra.mxu0 0.0
    %1611 = vmatprep.subr.mxu0 0.0
    %1612 = vmatpush1.msra.mxu0 0.0
    %1613 = vmatprep.subr.mxu0 0.0
    %1614 = vmatpush1.msra.mxu0 0.0
    %1615 = vmatprep.subr.mxu0 0.0
    %1616 = vmatpush1.msra.mxu0 0.0
    %1617 = vmatprep.subr.mxu0 0.0
    %1618 = vmatpush1.msra.mxu0 0.0
    %1619 = vmatprep.subr.mxu0 0.0
    %1620 = vmatpush1.msra.mxu0 0.0
    %1621 = vmatprep.subr.mxu0 0.0
    %1622 = vmatpush1.msra.mxu0 0.0
    %1623 = vmatprep.subr.mxu0 0.0
    %1624 = vmatpush1.msra.mxu0 0.0
    %1625 = vmatprep.subr.mxu0 0.0
    %1626 = vmatpush1.msra.mxu0 0.0
    %1627 = vmatprep.subr.mxu0 0.0
    %1628 = vmatpush1.msra.mxu0 0.0
    %1629 = vmatprep.subr.mxu0 0.0
    %1630 = vmatpush1.msra.mxu0 0.0
    %1631 = vmatprep.subr.mxu0 0.0
    %1632 = vmatpush1.msra.mxu0 0.0
    %1633 = vmatprep.subr.mxu0 0.0
    %1634 = vmatpush1.msra.mxu0 0.0
    %1635 = vmatprep.subr.mxu0 0.0
    %1636 = vmatpush1.msra.mxu0 0.0
    %1637 = vmatprep.subr.mxu0 0.0
    %1638 = vmatpush1.msra.mxu0 0.0
    %1639 = vmatprep.subr.mxu0 0.0
    %1640 = vmatpush1.msra.mxu0 0.0
    %1641 = vmatprep.subr.mxu0 0.0
    %1642 = vmatpush1.msra.mxu0 0.0
    %1643 = vmatprep.subr.mxu0 0.0
    %1644 = vmatpush1.msra.mxu0 0.0
    %1645 = vmatprep.subr.mxu0 0.0
    %1646 = vmatpush1.msra.mxu0 0.0
    %1647 = vmatprep.subr.mxu0 0.0
    %1648 = vmatpush1.msra.mxu0 0.0
    %1649 = vmatprep.subr.mxu0 0.0
    %1650 = vmatpush1.msra.mxu0 0.0
    %1651 = vmatprep.subr.mxu0 0.0
    %1652 = vmatpush1.msra.mxu0 0.0
    %1653 = vmatprep.mubr.f32.mxu0 0.0
    %1654 = vmatmul.mubr.f32.gmra.mrb[0].mxu0 %v1587
    %v1655 = vpop.f32.mrb[0].mxu0
    %v1656 = vadd.f32 %v1583, %v1655
    %v1657 = vpop.f32.mrb[0].mxu0
    %1658 = vdwg.mxu0
    %1659 = vrot.lane.b32.xlu0 %v193, 112
    %v1660 = vpop.permute.xlu0 %1659
    %1661 = vrot.lane.b32.xlu0 %v193, 80
    %v1662 = vpop.permute.xlu0 %1661
    %v1663 = vsel %vm210, %v1660, 0
    %v1665 = vsel %vm210, %v1662, 0
    %1667 = vmatprep.subr.mxu0 0.0
    %1668 = vmatpush1.xpose.msra.mxu0 %v1665
    %1669 = vmatprep.subr.mxu0 0.0
    %1670 = vmatpush1.xpose.msra.mxu0 0.0
    %1671 = vmatprep.subr.mxu0 0.0
    %1672 = vmatpush1.xpose.msra.mxu0 0.0
    %1673 = vmatprep.subr.mxu0 0.0
    %1674 = vmatpush1.xpose.msra.mxu0 0.0
    %1675 = vmatprep.subr.mxu0 0.0
    %1676 = vmatpush1.xpose.msra.mxu0 0.0
    %1677 = vmatprep.subr.mxu0 0.0
    %1678 = vmatpush1.xpose.msra.mxu0 0.0
    %1679 = vmatprep.subr.mxu0 0.0
    %1680 = vmatpush1.xpose.msra.mxu0 0.0
    %1681 = vmatprep.subr.mxu0 0.0
    %1682 = vmatpush1.xpose.msra.mxu0 0.0
    %1683 = vmatprep.subr.mxu0 0.0
    %1684 = vmatpush1.xpose.msra.mxu0 0.0
    %1685 = vmatprep.subr.mxu0 0.0
    %1686 = vmatpush1.xpose.msra.mxu0 0.0
    %1687 = vmatprep.subr.mxu0 0.0
    %1688 = vmatpush1.xpose.msra.mxu0 0.0
    %1689 = vmatprep.subr.mxu0 0.0
    %1690 = vmatpush1.xpose.msra.mxu0 0.0
    %1691 = vmatprep.subr.mxu0 0.0
    %1692 = vmatpush1.xpose.msra.mxu0 0.0
    %1693 = vmatprep.subr.mxu0 0.0
    %1694 = vmatpush1.xpose.msra.mxu0 0.0
    %1695 = vmatprep.subr.mxu0 0.0
    %1696 = vmatpush1.xpose.msra.mxu0 0.0
    %1697 = vmatprep.subr.mxu0 0.0
    %1698 = vmatpush1.xpose.msra.mxu0 0.0
    %1699 = vmatprep.subr.mxu0 0.0
    %1700 = vmatpush1.xpose.msra.mxu0 0.0
    %1701 = vmatprep.subr.mxu0 0.0
    %1702 = vmatpush1.xpose.msra.mxu0 0.0
    %1703 = vmatprep.subr.mxu0 0.0
    %1704 = vmatpush1.xpose.msra.mxu0 0.0
    %1705 = vmatprep.subr.mxu0 0.0
    %1706 = vmatpush1.xpose.msra.mxu0 0.0
    %1707 = vmatprep.subr.mxu0 0.0
    %1708 = vmatpush1.xpose.msra.mxu0 0.0
    %1709 = vmatprep.subr.mxu0 0.0
    %1710 = vmatpush1.xpose.msra.mxu0 0.0
    %1711 = vmatprep.subr.mxu0 0.0
    %1712 = vmatpush1.xpose.msra.mxu0 0.0
    %1713 = vmatprep.subr.mxu0 0.0
    %1714 = vmatpush1.xpose.msra.mxu0 0.0
    %1715 = vmatprep.subr.mxu0 0.0
    %1716 = vmatpush1.xpose.msra.mxu0 0.0
    %1717 = vmatprep.subr.mxu0 0.0
    %1718 = vmatpush1.xpose.msra.mxu0 0.0
    %1719 = vmatprep.subr.mxu0 0.0
    %1720 = vmatpush1.xpose.msra.mxu0 0.0
    %1721 = vmatprep.subr.mxu0 0.0
    %1722 = vmatpush1.xpose.msra.mxu0 0.0
    %1723 = vmatprep.subr.mxu0 0.0
    %1724 = vmatpush1.xpose.msra.mxu0 0.0
    %1725 = vmatprep.subr.mxu0 0.0
    %1726 = vmatpush1.xpose.msra.mxu0 0.0
    %1727 = vmatprep.subr.mxu0 0.0
    %1728 = vmatpush1.xpose.msra.mxu0 0.0
    %1729 = vmatprep.subr.mxu0 0.0
    %1730 = vmatpush1.xpose.msra.mxu0 0.0
    %1731 = vmatprep.mubr.f32.mxu0 0.0
    %1732 = vmatmul.mubr.f32.gmra.mrb[0].mxu0 %v1663
    %v1733 = vpop.f32.mrb[0].mxu0
    %v1734 = vadd.f32 %v1177, %v1733
    %v1735 = vpop.f32.mrb[0].mxu0
    %1736 = vdwg.mxu0
    %v1737 = vsel %vm210, %v1734, -inf
    %1738 = vmax.xlane.f32.xlu0 %v1737
    %v1739 = vpop.xlane.xlu0 %1738
    %v1740 = vsub.f32 %v1734, %v1739
    %v1741 = vmul.f32 %v1740, 1.442695
    %v1742 = vpow.pop %v1741
    %v1743 = vsel %vm210, %v1742, 0.0
    %1744 = vadd.xlane.f32.xlu0 %v1743
    %v1745 = vpop.xlane.xlu0 %1744
    %v1746 = vrcp.pop %v1745
    %v1747 = vmul.f32 %v1745, %v1746
    %v1748 = vsub.f32 2.0, %v1747
    %v1749 = vmul.f32 %v1746, %v1748
    %v1750 = vmul.f32 %v1742, %v1749
    %1751 = vrot.lane.b32.xlu0 %v193, 48
    %v1752 = vpop.permute.xlu0 %1751
    %v1755 = vsel %vm210, %v1750, 0
    %1757 = vmatprep.subr.mxu0 0.0
    %1758 = vmatpush1.msra.mxu0 %v1752
    %1759 = vmatprep.subr.mxu0 0.0
    %1760 = vmatpush1.msra.mxu0 0.0
    %1761 = vmatprep.subr.mxu0 0.0
    %1762 = vmatpush1.msra.mxu0 0.0
    %1763 = vmatprep.subr.mxu0 0.0
    %1764 = vmatpush1.msra.mxu0 0.0
    %1765 = vmatprep.subr.mxu0 0.0
    %1766 = vmatpush1.msra.mxu0 0.0
    %1767 = vmatprep.subr.mxu0 0.0
    %1768 = vmatpush1.msra.mxu0 0.0
    %1769 = vmatprep.subr.mxu0 0.0
    %1770 = vmatpush1.msra.mxu0 0.0
    %1771 = vmatprep.subr.mxu0 0.0
    %1772 = vmatpush1.msra.mxu0 0.0
    %1773 = vmatprep.subr.mxu0 0.0
    %1774 = vmatpush1.msra.mxu0 0.0
    %1775 = vmatprep.subr.mxu0 0.0
    %1776 = vmatpush1.msra.mxu0 0.0
    %1777 = vmatprep.subr.mxu0 0.0
    %1778 = vmatpush1.msra.mxu0 0.0
    %1779 = vmatprep.subr.mxu0 0.0
    %1780 = vmatpush1.msra.mxu0 0.0
    %1781 = vmatprep.subr.mxu0 0.0
    %1782 = vmatpush1.msra.mxu0 0.0
    %1783 = vmatprep.subr.mxu0 0.0
    %1784 = vmatpush1.msra.mxu0 0.0
    %1785 = vmatprep.subr.mxu0 0.0
    %1786 = vmatpush1.msra.mxu0 0.0
    %1787 = vmatprep.subr.mxu0 0.0
    %1788 = vmatpush1.msra.mxu0 0.0
    %1789 = vmatprep.subr.mxu0 0.0
    %1790 = vmatpush1.msra.mxu0 0.0
    %1791 = vmatprep.subr.mxu0 0.0
    %1792 = vmatpush1.msra.mxu0 0.0
    %1793 = vmatprep.subr.mxu0 0.0
    %1794 = vmatpush1.msra.mxu0 0.0
    %1795 = vmatprep.subr.mxu0 0.0
    %1796 = vmatpush1.msra.mxu0 0.0
    %1797 = vmatprep.subr.mxu0 0.0
    %1798 = vmatpush1.msra.mxu0 0.0
    %1799 = vmatprep.subr.mxu0 0.0
    %1800 = vmatpush1.msra.mxu0 0.0
    %1801 = vmatprep.subr.mxu0 0.0
    %1802 = vmatpush1.msra.mxu0 0.0
    %1803 = vmatprep.subr.mxu0 0.0
    %1804 = vmatpush1.msra.mxu0 0.0
    %1805 = vmatprep.subr.mxu0 0.0
    %1806 = vmatpush1.msra.mxu0 0.0
    %1807 = vmatprep.subr.mxu0 0.0
    %1808 = vmatpush1.msra.mxu0 0.0
    %1809 = vmatprep.subr.mxu0 0.0
    %1810 = vmatpush1.msra.mxu0 0.0
    %1811 = vmatprep.subr.mxu0 0.0
    %1812 = vmatpush1.msra.mxu0 0.0
    %1813 = vmatprep.subr.mxu0 0.0
    %1814 = vmatpush1.msra.mxu0 0.0
    %1815 = vmatprep.subr.mxu0 0.0
    %1816 = vmatpush1.msra.mxu0 0.0
    %1817 = vmatprep.subr.mxu0 0.0
    %1818 = vmatpush1.msra.mxu0 0.0
    %1819 = vmatprep.subr.mxu0 0.0
    %1820 = vmatpush1.msra.mxu0 0.0
    %1821 = vmatprep.mubr.f32.mxu0 0.0
    %1822 = vmatmul.mubr.f32.gmra.mrb[0].mxu0 %v1755
    %v1823 = vpop.f32.mrb[0].mxu0
    %v1824 = vadd.f32 0.0, %v1823
    %v1825 = vpop.f32.mrb[0].mxu0
    %1826 = vdwg.mxu0
    %v1828 = vsel %vm210, %v1824, 0
    %1830 = vmatprep.subr.mxu0 0.0
    %1831 = vmatpush1.msra.mxu0 %v201
    %1832 = vmatprep.subr.mxu0 0.0
    %1833 = vmatpush1.msra.mxu0 0.0
    %1834 = vmatprep.subr.mxu0 0.0
    %1835 = vmatpush1.msra.mxu0 0.0
    %1836 = vmatprep.subr.mxu0 0.0
    %1837 = vmatpush1.msra.mxu0 0.0
    %1838 = vmatprep.subr.mxu0 0.0
    %1839 = vmatpush1.msra.mxu0 0.0
    %1840 = vmatprep.subr.mxu0 0.0
    %1841 = vmatpush1.msra.mxu0 0.0
    %1842 = vmatprep.subr.mxu0 0.0
    %1843 = vmatpush1.msra.mxu0 0.0
    %1844 = vmatprep.subr.mxu0 0.0
    %1845 = vmatpush1.msra.mxu0 0.0
    %1846 = vmatprep.subr.mxu0 0.0
    %1847 = vmatpush1.msra.mxu0 0.0
    %1848 = vmatprep.subr.mxu0 0.0
    %1849 = vmatpush1.msra.mxu0 0.0
    %1850 = vmatprep.subr.mxu0 0.0
    %1851 = vmatpush1.msra.mxu0 0.0
    %1852 = vmatprep.subr.mxu0 0.0
    %1853 = vmatpush1.msra.mxu0 0.0
    %1854 = vmatprep.subr.mxu0 0.0
    %1855 = vmatpush1.msra.mxu0 0.0
    %1856 = vmatprep.subr.mxu0 0.0
    %1857 = vmatpush1.msra.mxu0 0.0
    %1858 = vmatprep.subr.mxu0 0.0
    %1859 = vmatpush1.msra.mxu0 0.0
    %1860 = vmatprep.subr.mxu0 0.0
    %1861 = vmatpush1.msra.mxu0 0.0
    %1862 = vmatprep.subr.mxu0 0.0
    %1863 = vmatpush1.msra.mxu0 0.0
    %1864 = vmatprep.subr.mxu0 0.0
    %1865 = vmatpush1.msra.mxu0 0.0
    %1866 = vmatprep.subr.mxu0 0.0
    %1867 = vmatpush1.msra.mxu0 0.0
    %1868 = vmatprep.subr.mxu0 0.0
    %1869 = vmatpush1.msra.mxu0 0.0
    %1870 = vmatprep.subr.mxu0 0.0
    %1871 = vmatpush1.msra.mxu0 0.0
    %1872 = vmatprep.subr.mxu0 0.0
    %1873 = vmatpush1.msra.mxu0 0.0
    %1874 = vmatprep.subr.mxu0 0.0
    %1875 = vmatpush1.msra.mxu0 0.0
    %1876 = vmatprep.subr.mxu0 0.0
    %1877 = vmatpush1.msra.mxu0 0.0
    %1878 = vmatprep.subr.mxu0 0.0
    %1879 = vmatpush1.msra.mxu0 0.0
    %1880 = vmatprep.subr.mxu0 0.0
    %1881 = vmatpush1.msra.mxu0 0.0
    %1882 = vmatprep.subr.mxu0 0.0
    %1883 = vmatpush1.msra.mxu0 0.0
    %1884 = vmatprep.subr.mxu0 0.0
    %1885 = vmatpush1.msra.mxu0 0.0
    %1886 = vmatprep.subr.mxu0 0.0
    %1887 = vmatpush1.msra.mxu0 0.0
    %1888 = vmatprep.subr.mxu0 0.0
    %1889 = vmatpush1.msra.mxu0 0.0
    %1890 = vmatprep.subr.mxu0 0.0
    %1891 = vmatpush1.msra.mxu0 0.0
    %1892 = vmatprep.subr.mxu0 0.0
    %1893 = vmatpush1.msra.mxu0 0.0
    %1894 = vmatprep.mubr.f32.mxu0 0.0
    %1895 = vmatmul.mubr.f32.gmra.mrb[0].mxu0 %v1828
    %v1896 = vpop.f32.mrb[0].mxu0
    %v1897 = vadd.f32 0.0, %v1896
    %v1898 = vpop.f32.mrb[0].mxu0
    %1899 = vdwg.mxu0
    %v1900 = vadd.f32 %v1656, %v1897
    %1901 = vrot.lane.b32.xlu0 %v193, 104
    %v1902 = vpop.permute.xlu0 %1901
    %1903 = vrot.lane.b32.xlu0 %v193, 72
    %v1904 = vpop.permute.xlu0 %1903
    %v1905 = vsel %vm210, %v1902, 0
    %v1907 = vsel %vm210, %v1904, 0
    %1909 = vmatprep.subr.mxu0 0.0
    %1910 = vmatpush1.xpose.msra.mxu0 %v1907
    %1911 = vmatprep.subr.mxu0 0.0
    %1912 = vmatpush1.xpose.msra.mxu0 0.0
    %1913 = vmatprep.subr.mxu0 0.0
    %1914 = vmatpush1.xpose.msra.mxu0 0.0
    %1915 = vmatprep.subr.mxu0 0.0
    %1916 = vmatpush1.xpose.msra.mxu0 0.0
    %1917 = vmatprep.subr.mxu0 0.0
    %1918 = vmatpush1.xpose.msra.mxu0 0.0
    %1919 = vmatprep.subr.mxu0 0.0
    %1920 = vmatpush1.xpose.msra.mxu0 0.0
    %1921 = vmatprep.subr.mxu0 0.0
    %1922 = vmatpush1.xpose.msra.mxu0 0.0
    %1923 = vmatprep.subr.mxu0 0.0
    %1924 = vmatpush1.xpose.msra.mxu0 0.0
    %1925 = vmatprep.subr.mxu0 0.0
    %1926 = vmatpush1.xpose.msra.mxu0 0.0
    %1927 = vmatprep.subr.mxu0 0.0
    %1928 = vmatpush1.xpose.msra.mxu0 0.0
    %1929 = vmatprep.subr.mxu0 0.0
    %1930 = vmatpush1.xpose.msra.mxu0 0.0
    %1931 = vmatprep.subr.mxu0 0.0
    %1932 = vmatpush1.xpose.msra.mxu0 0.0
    %1933 = vmatprep.subr.mxu0 0.0
    %1934 = vmatpush1.xpose.msra.mxu0 0.0
    %1935 = vmatprep.subr.mxu0 0.0
    %1936 = vmatpush1.xpose.msra.mxu0 0.0
    %1937 = vmatprep.subr.mxu0 0.0
    %1938 = vmatpush1.xpose.msra.mxu0 0.0
    %1939 = vmatprep.subr.mxu0 0.0
    %1940 = vmatpush1.xpose.msra.mxu0 0.0
    %1941 = vmatprep.subr.mxu0 0.0
    %1942 = vmatpush1.xpose.msra.mxu0 0.0
    %1943 = vmatprep.subr.mxu0 0.0
    %1944 = vmatpush1.xpose.msra.mxu0 0.0
    %1945 = vmatprep.subr.mxu0 0.0
    %1946 = vmatpush1.xpose.msra.mxu0 0.0
    %1947 = vmatprep.subr.mxu0 0.0
    %1948 = vmatpush1.xpose.msra.mxu0 0.0
    %1949 = vmatprep.subr.mxu0 0.0
    %1950 = vmatpush1.xpose.msra.mxu0 0.0
    %1951 = vmatprep.subr.mxu0 0.0
    %1952 = vmatpush1.xpose.msra.mxu0 0.0
    %1953 = vmatprep.subr.mxu0 0.0
    %1954 = vmatpush1.xpose.msra.mxu0 0.0
    %1955 = vmatprep.subr.mxu0 0.0
    %1956 = vmatpush1.xpose.msra.mxu0 0.0
    %1957 = vmatprep.subr.mxu0 0.0
    %1958 = vmatpush1.xpose.msra.mxu0 0.0
    %1959 = vmatprep.subr.mxu0 0.0
    %1960 = vmatpush1.xpose.msra.mxu0 0.0
    %1961 = vmatprep.subr.mxu0 0.0
    %1962 = vmatpush1.xpose.msra.mxu0 0.0
    %1963 = vmatprep.subr.mxu0 0.0
    %1964 = vmatpush1.xpose.msra.mxu0 0.0
    %1965 = vmatprep.subr.mxu0 0.0
    %1966 = vmatpush1.xpose.msra.mxu0 0.0
    %1967 = vmatprep.subr.mxu0 0.0
    %1968 = vmatpush1.xpose.msra.mxu0 0.0
    %1969 = vmatprep.subr.mxu0 0.0
    %1970 = vmatpush1.xpose.msra.mxu0 0.0
    %1971 = vmatprep.subr.mxu0 0.0
    %1972 = vmatpush1.xpose.msra.mxu0 0.0
    %1973 = vmatprep.mubr.f32.mxu0 0.0
    %1974 = vmatmul.mubr.f32.gmra.mrb[0].mxu0 %v1905
    %v1975 = vpop.f32.mrb[0].mxu0
    %v1976 = vadd.f32 %v1177, %v1975
    %v1977 = vpop.f32.mrb[0].mxu0
    %1978 = vdwg.mxu0
    %v1979 = vsel %vm210, %v1976, -inf
    %1980 = vmax.xlane.f32.xlu0 %v1979
    %v1981 = vpop.xlane.xlu0 %1980
    %v1982 = vsub.f32 %v1976, %v1981
    %v1983 = vmul.f32 %v1982, 1.442695
    %v1984 = vpow.pop %v1983
    %v1985 = vsel %vm210, %v1984, 0.0
    %1986 = vadd.xlane.f32.xlu0 %v1985
    %v1987 = vpop.xlane.xlu0 %1986
    %v1988 = vrcp.pop %v1987
    %v1989 = vmul.f32 %v1987, %v1988
    %v1990 = vsub.f32 2.0, %v1989
    %v1991 = vmul.f32 %v1988, %v1990
    %v1992 = vmul.f32 %v1984, %v1991
    %1993 = vrot.lane.b32.xlu0 %v193, 40
    %v1994 = vpop.permute.xlu0 %1993
    %v1997 = vsel %vm210, %v1992, 0
    %1999 = vmatprep.subr.mxu0 0.0
    %2000 = vmatpush1.msra.mxu0 %v1994
    %2001 = vmatprep.subr.mxu0 0.0
    %2002 = vmatpush1.msra.mxu0 0.0
    %2003 = vmatprep.subr.mxu0 0.0
    %2004 = vmatpush1.msra.mxu0 0.0
    %2005 = vmatprep.subr.mxu0 0.0
    %2006 = vmatpush1.msra.mxu0 0.0
    %2007 = vmatprep.subr.mxu0 0.0
    %2008 = vmatpush1.msra.mxu0 0.0
    %2009 = vmatprep.subr.mxu0 0.0
    %2010 = vmatpush1.msra.mxu0 0.0
    %2011 = vmatprep.subr.mxu0 0.0
    %2012 = vmatpush1.msra.mxu0 0.0
    %2013 = vmatprep.subr.mxu0 0.0
    %2014 = vmatpush1.msra.mxu0 0.0
    %2015 = vmatprep.subr.mxu0 0.0
    %2016 = vmatpush1.msra.mxu0 0.0
    %2017 = vmatprep.subr.mxu0 0.0
    %2018 = vmatpush1.msra.mxu0 0.0
    %2019 = vmatprep.subr.mxu0 0.0
    %2020 = vmatpush1.msra.mxu0 0.0
    %2021 = vmatprep.subr.mxu0 0.0
    %2022 = vmatpush1.msra.mxu0 0.0
    %2023 = vmatprep.subr.mxu0 0.0
    %2024 = vmatpush1.msra.mxu0 0.0
    %2025 = vmatprep.subr.mxu0 0.0
    %2026 = vmatpush1.msra.mxu0 0.0
    %2027 = vmatprep.subr.mxu0 0.0
    %2028 = vmatpush1.msra.mxu0 0.0
    %2029 = vmatprep.subr.mxu0 0.0
    %2030 = vmatpush1.msra.mxu0 0.0
    %2031 = vmatprep.subr.mxu0 0.0
    %2032 = vmatpush1.msra.mxu0 0.0
    %2033 = vmatprep.subr.mxu0 0.0
    %2034 = vmatpush1.msra.mxu0 0.0
    %2035 = vmatprep.subr.mxu0 0.0
    %2036 = vmatpush1.msra.mxu0 0.0
    %2037 = vmatprep.subr.mxu0 0.0
    %2038 = vmatpush1.msra.mxu0 0.0
    %2039 = vmatprep.subr.mxu0 0.0
    %2040 = vmatpush1.msra.mxu0 0.0
    %2041 = vmatprep.subr.mxu0 0.0
    %2042 = vmatpush1.msra.mxu0 0.0
    %2043 = vmatprep.subr.mxu0 0.0
    %2044 = vmatpush1.msra.mxu0 0.0
    %2045 = vmatprep.subr.mxu0 0.0
    %2046 = vmatpush1.msra.mxu0 0.0
    %2047 = vmatprep.subr.mxu0 0.0
    %2048 = vmatpush1.msra.mxu0 0.0
    %2049 = vmatprep.subr.mxu0 0.0
    %2050 = vmatpush1.msra.mxu0 0.0
    %2051 = vmatprep.subr.mxu0 0.0
    %2052 = vmatpush1.msra.mxu0 0.0
    %2053 = vmatprep.subr.mxu0 0.0
    %2054 = vmatpush1.msra.mxu0 0.0
    %2055 = vmatprep.subr.mxu0 0.0
    %2056 = vmatpush1.msra.mxu0 0.0
    %2057 = vmatprep.subr.mxu0 0.0
    %2058 = vmatpush1.msra.mxu0 0.0
    %2059 = vmatprep.subr.mxu0 0.0
    %2060 = vmatpush1.msra.mxu0 0.0
    %2061 = vmatprep.subr.mxu0 0.0
    %2062 = vmatpush1.msra.mxu0 0.0
    %2063 = vmatprep.mubr.f32.mxu0 0.0
    %2064 = vmatmul.mubr.f32.gmra.mrb[0].mxu0 %v1997
    %v2065 = vpop.f32.mrb[0].mxu0
    %v2066 = vadd.f32 0.0, %v2065
    %v2067 = vpop.f32.mrb[0].mxu0
    %2068 = vdwg.mxu0
    %v2070 = vsel %vm210, %v2066, 0
    %2072 = vmatprep.subr.mxu0 0.0
    %2073 = vmatpush1.msra.mxu0 %v202
    %2074 = vmatprep.subr.mxu0 0.0
    %2075 = vmatpush1.msra.mxu0 0.0
    %2076 = vmatprep.subr.mxu0 0.0
    %2077 = vmatpush1.msra.mxu0 0.0
    %2078 = vmatprep.subr.mxu0 0.0
    %2079 = vmatpush1.msra.mxu0 0.0
    %2080 = vmatprep.subr.mxu0 0.0
    %2081 = vmatpush1.msra.mxu0 0.0
    %2082 = vmatprep.subr.mxu0 0.0
    %2083 = vmatpush1.msra.mxu0 0.0
    %2084 = vmatprep.subr.mxu0 0.0
    %2085 = vmatpush1.msra.mxu0 0.0
    %2086 = vmatprep.subr.mxu0 0.0
    %2087 = vmatpush1.msra.mxu0 0.0
    %2088 = vmatprep.subr.mxu0 0.0
    %2089 = vmatpush1.msra.mxu0 0.0
    %2090 = vmatprep.subr.mxu0 0.0
    %2091 = vmatpush1.msra.mxu0 0.0
    %2092 = vmatprep.subr.mxu0 0.0
    %2093 = vmatpush1.msra.mxu0 0.0
    %2094 = vmatprep.subr.mxu0 0.0
    %2095 = vmatpush1.msra.mxu0 0.0
    %2096 = vmatprep.subr.mxu0 0.0
    %2097 = vmatpush1.msra.mxu0 0.0
    %2098 = vmatprep.subr.mxu0 0.0
    %2099 = vmatpush1.msra.mxu0 0.0
    %2100 = vmatprep.subr.mxu0 0.0
    %2101 = vmatpush1.msra.mxu0 0.0
    %2102 = vmatprep.subr.mxu0 0.0
    %2103 = vmatpush1.msra.mxu0 0.0
    %2104 = vmatprep.subr.mxu0 0.0
    %2105 = vmatpush1.msra.mxu0 0.0
    %2106 = vmatprep.subr.mxu0 0.0
    %2107 = vmatpush1.msra.mxu0 0.0
    %2108 = vmatprep.subr.mxu0 0.0
    %2109 = vmatpush1.msra.mxu0 0.0
    %2110 = vmatprep.subr.mxu0 0.0
    %2111 = vmatpush1.msra.mxu0 0.0
    %2112 = vmatprep.subr.mxu0 0.0
    %2113 = vmatpush1.msra.mxu0 0.0
    %2114 = vmatprep.subr.mxu0 0.0
    %2115 = vmatpush1.msra.mxu0 0.0
    %2116 = vmatprep.subr.mxu0 0.0
    %2117 = vmatpush1.msra.mxu0 0.0
    %2118 = vmatprep.subr.mxu0 0.0
    %2119 = vmatpush1.msra.mxu0 0.0
    %2120 = vmatprep.subr.mxu0 0.0
    %2121 = vmatpush1.msra.mxu0 0.0
    %2122 = vmatprep.subr.mxu0 0.0
    %2123 = vmatpush1.msra.mxu0 0.0
    %2124 = vmatprep.subr.mxu0 0.0
    %2125 = vmatpush1.msra.mxu0 0.0
    %2126 = vmatprep.subr.mxu0 0.0
    %2127 = vmatpush1.msra.mxu0 0.0
    %2128 = vmatprep.subr.mxu0 0.0
    %2129 = vmatpush1.msra.mxu0 0.0
    %2130 = vmatprep.subr.mxu0 0.0
    %2131 = vmatpush1.msra.mxu0 0.0
    %2132 = vmatprep.subr.mxu0 0.0
    %2133 = vmatpush1.msra.mxu0 0.0
    %2134 = vmatprep.subr.mxu0 0.0
    %2135 = vmatpush1.msra.mxu0 0.0
    %2136 = vmatprep.mubr.f32.mxu0 0.0
    %2137 = vmatmul.mubr.f32.gmra.mrb[0].mxu0 %v2070
    %v2138 = vpop.f32.mrb[0].mxu0
    %v2139 = vadd.f32 0.0, %v2138
    %v2140 = vpop.f32.mrb[0].mxu0
    %2141 = vdwg.mxu0
    %v2142 = vadd.f32 %v1900, %v2139
    %2143 = vst.msk [vmem:[#allocation2 + $0x8] sm:$0xff] %vm50, %v2142
    %v2144 = vld [vmem:[#allocation2] sm:$0xff]
    %v2145 = vld [vmem:[#allocation2 + $0x8] sm:$0xff]
    %v2146 = vadd.f32 %v47, %v2144
    %v2147 = vadd.f32 %v48, %v2145
    %v2148 = vlaneseq
    %v2149 = vshrl.u32 %v2148, 7
    %v2150 = vsub.s32 0, %v2149
    %v2151 = vrot.slane %v49, %v2150
    %v2152 = vadd.f32 %v2146, %v2151
    %v2153 = vadd.f32 %v2147, %v2151
    %v2154 = vsel %vm50, %v2152, 0.0
    %2155 = vadd.xlane.f32.xlu0 %v2154
    %v2156 = vpop.xlane.xlu0 %2155
    %v2157 = vsel %vm50, %v2153, 0.0
    %2158 = vadd.xlane.f32.xlu0 %v2157
    %v2159 = vpop.xlane.xlu0 %2158
    %v2160 = vmul.f32 %v2156, %v57
    %v2161 = vmul.f32 %v2159, %v57
    %v2162 = vsub.f32 %v2152, %v2160
    %v2163 = vsub.f32 %v2153, %v2161
    %v2164 = vmul.f32 %v2162, %v2162
    %v2165 = vmul.f32 %v2163, %v2163
    %v2166 = vsel %vm50, %v2164, 0.0
    %2167 = vadd.xlane.f32.xlu0 %v2166
    %v2168 = vpop.xlane.xlu0 %2167
    %v2169 = vsel %vm50, %v2165, 0.0
    %2170 = vadd.xlane.f32.xlu0 %v2169
    %v2171 = vpop.xlane.xlu0 %2170
    %v2172 = vmul.f32 %v2168, 0.032258064
    %v2173 = vmul.f32 %v2171, 0.032258064
    %v2174 = vrsqrt.pop %v2172
    %v2175 = vmul.f32 %v2172, %v2174
    %vm2176 = vcmp.eq.f32.partialorder %v2172, inf
    %v2177 = vsel %vm2176, %v2172, %v2175
    %vm2178 = vcmp.eq.f32.partialorder %v2172, 0.0
    %v2179 = vand.u32 %v2172, 2147483648
    %v2180 = vsel %vm2178, %v2179, %v2177
    %v2181 = vrsqrt.pop %v2173
    %v2182 = vmul.f32 %v2173, %v2181
    %vm2183 = vcmp.eq.f32.partialorder %v2173, inf
    %v2184 = vsel %vm2183, %v2173, %v2182
    %vm2185 = vcmp.eq.f32.partialorder %v2173, 0.0
    %v2186 = vand.u32 %v2173, 2147483648
    %v2187 = vsel %vm2185, %v2186, %v2184
    %v2188 = vadd.f32 %v2180, 1e-06
    %v2189 = vadd.f32 %v2187, 1e-06
    %v2190 = vrcp.pop %v2188
    %v2191 = vrcp.pop %v2189
    %v2192 = vlaneseq
    %v2193 = vshrl.u32 %v2192, 7
    %v2194 = vsub.s32 3, %v2193
    %v2195 = vrot.slane %v49, %v2194
    %v2196 = vmul.f32 %v2195, %v2162
    %v2197 = vmul.f32 %v2195, %v2163
    %v2198 = vmul.f32 %v2196, %v2190
    %v2199 = vmul.f32 %v2197, %v2191
    %v2200 = vlaneseq
    %v2201 = vshrl.u32 %v2200, 7
    %v2202 = vsub.s32 4, %v2201
    %v2203 = vrot.slane %v49, %v2202
    %v2204 = vadd.f32 %v2198, %v2203
    %v2205 = vadd.f32 %v2199, %v2203
    %v2206 = vld [vmem:[%s5] sm:$0xff]
    %v2207 = vld [vmem:[%s5 + $0x8] sm:$0xff]
    %v2208 = vld [vmem:[%s5 + $0x10] sm:$0xff]
    %v2209 = vld [vmem:[%s5 + $0x18] sm:$0xff]
    %v2210 = vld [vmem:[%s6] sm:$0x1]
    %v2212 = vlaneseq
    %v2213 = vshrl.u32 %v2212, 7
    %v2214 = vsub.s32 0, %v2213
    %v2215 = vrot.slane %v2210, %v2214
    %v2218 = vsel %vm50, %v2204, 0
    %v2221 = vsel %vm50, %v2205, 0
    %2223 = vmatprep.subr.mxu0 0.0
    %2224 = vmatpush1.msra.mxu0 %v2206
    %2225 = vmatprep.subr.mxu0 0.0
    %2226 = vmatpush1.msra.mxu0 %v2207
    %2227 = vmatprep.subr.mxu0 0.0
    %2228 = vmatpush1.msra.mxu0 %v2208
    %2229 = vmatprep.subr.mxu0 0.0
    %2230 = vmatpush1.msra.mxu0 %v2209
    %2231 = vmatprep.subr.mxu0 0.0
    %2232 = vmatpush1.msra.mxu0 0.0
    %2233 = vmatprep.subr.mxu0 0.0
    %2234 = vmatpush1.msra.mxu0 0.0
    %2235 = vmatprep.subr.mxu0 0.0
    %2236 = vmatpush1.msra.mxu0 0.0
    %2237 = vmatprep.subr.mxu0 0.0
    %2238 = vmatpush1.msra.mxu0 0.0
    %2239 = vmatprep.subr.mxu0 0.0
    %2240 = vmatpush1.msra.mxu0 0.0
    %2241 = vmatprep.subr.mxu0 0.0
    %2242 = vmatpush1.msra.mxu0 0.0
    %2243 = vmatprep.subr.mxu0 0.0
    %2244 = vmatpush1.msra.mxu0 0.0
    %2245 = vmatprep.subr.mxu0 0.0
    %2246 = vmatpush1.msra.mxu0 0.0
    %2247 = vmatprep.subr.mxu0 0.0
    %2248 = vmatpush1.msra.mxu0 0.0
    %2249 = vmatprep.subr.mxu0 0.0
    %2250 = vmatpush1.msra.mxu0 0.0
    %2251 = vmatprep.subr.mxu0 0.0
    %2252 = vmatpush1.msra.mxu0 0.0
    %2253 = vmatprep.subr.mxu0 0.0
    %2254 = vmatpush1.msra.mxu0 0.0
    %2255 = vmatprep.subr.mxu0 0.0
    %2256 = vmatpush1.msra.mxu0 0.0
    %2257 = vmatprep.subr.mxu0 0.0
    %2258 = vmatpush1.msra.mxu0 0.0
    %2259 = vmatprep.subr.mxu0 0.0
    %2260 = vmatpush1.msra.mxu0 0.0
    %2261 = vmatprep.subr.mxu0 0.0
    %2262 = vmatpush1.msra.mxu0 0.0
    %2263 = vmatprep.subr.mxu0 0.0
    %2264 = vmatpush1.msra.mxu0 0.0
    %2265 = vmatprep.subr.mxu0 0.0
    %2266 = vmatpush1.msra.mxu0 0.0
    %2267 = vmatprep.subr.mxu0 0.0
    %2268 = vmatpush1.msra.mxu0 0.0
    %2269 = vmatprep.subr.mxu0 0.0
    %2270 = vmatpush1.msra.mxu0 0.0
    %2271 = vmatprep.subr.mxu0 0.0
    %2272 = vmatpush1.msra.mxu0 0.0
    %2273 = vmatprep.subr.mxu0 0.0
    %2274 = vmatpush1.msra.mxu0 0.0
    %2275 = vmatprep.subr.mxu0 0.0
    %2276 = vmatpush1.msra.mxu0 0.0
    %2277 = vmatprep.subr.mxu0 0.0
    %2278 = vmatpush1.msra.mxu0 0.0
    %2279 = vmatprep.subr.mxu0 0.0
    %2280 = vmatpush1.msra.mxu0 0.0
    %2281 = vmatprep.subr.mxu0 0.0
    %2282 = vmatpush1.msra.mxu0 0.0
    %2283 = vmatprep.subr.mxu0 0.0
    %2284 = vmatpush1.msra.mxu0 0.0
    %2285 = vmatprep.subr.mxu0 0.0
    %2286 = vmatpush1.msra.mxu0 0.0
    %2287 = vmatprep.mubr.f32.mxu0 0.0
    %2288 = vmatmul.mubr.f32.gmra.mrb[0].mxu0 %v2218
    %v2289 = vpop.f32.mrb[0].mxu0
    %v2290 = vadd.f32 %v2215, %v2289
    %v2291 = vpop.f32.mrb[0].mxu0
    %2292 = vmatprep.mubr.f32.mxu0 0.0
    %2293 = vmatmul.mubr.f32.gmra.mrb[0].mxu0 %v2221
    %v2294 = vpop.f32.mrb[0].mxu0
    %v2295 = vadd.f32 %v2215, %v2294
    %v2296 = vpop.f32.mrb[0].mxu0
    %2297 = vdwg.mxu0
    %v2298 = vmax.f32 %v2290, 0.0
    %v2299 = vmax.f32 %v2295, 0.0
    %v2300 = vld [vmem:[%s7] sm:$0xff]
    %v2301 = vld [vmem:[%s7 + $0x8] sm:$0xff]
    %v2302 = vld [vmem:[%s7 + $0x10] sm:$0xff]
    %v2303 = vld [vmem:[%s7 + $0x18] sm:$0xff]
    %v2304 = vld [vmem:[%s7 + $0x20] sm:$0xff]
    %v2305 = vld [vmem:[%s7 + $0x28] sm:$0xff]
    %v2306 = vld [vmem:[%s7 + $0x30] sm:$0xff]
    %v2307 = vld [vmem:[%s7 + $0x38] sm:$0xff]
    %v2308 = vlaneseq
    %v2309 = vshrl.u32 %v2308, 7
    %v2310 = vsub.s32 5, %v2309
    %v2311 = vrot.slane %v49, %v2310
    %vm2312 = vcmask 523264
    %v2314 = vsel %vm2312, %v2298, 0
    %v2317 = vsel %vm2312, %v2299, 0
    %2319 = vmatprep.subr.mxu0 0.0
    %2320 = vmatpush1.msra.mxu0 %v2300
    %2321 = vmatprep.subr.mxu0 0.0
    %2322 = vmatpush1.msra.mxu0 %v2301
    %2323 = vmatprep.subr.mxu0 0.0
    %2324 = vmatpush1.msra.mxu0 %v2302
    %2325 = vmatprep.subr.mxu0 0.0
    %2326 = vmatpush1.msra.mxu0 %v2303
    %2327 = vmatprep.subr.mxu0 0.0
    %2328 = vmatpush1.msra.mxu0 %v2304
    %2329 = vmatprep.subr.mxu0 0.0
    %2330 = vmatpush1.msra.mxu0 %v2305
    %2331 = vmatprep.subr.mxu0 0.0
    %2332 = vmatpush1.msra.mxu0 %v2306
    %2333 = vmatprep.subr.mxu0 0.0
    %2334 = vmatpush1.msra.mxu0 %v2307
    %2335 = vmatprep.subr.mxu0 0.0
    %2336 = vmatpush1.msra.mxu0 0.0
    %2337 = vmatprep.subr.mxu0 0.0
    %2338 = vmatpush1.msra.mxu0 0.0
    %2339 = vmatprep.subr.mxu0 0.0
    %2340 = vmatpush1.msra.mxu0 0.0
    %2341 = vmatprep.subr.mxu0 0.0
    %2342 = vmatpush1.msra.mxu0 0.0
    %2343 = vmatprep.subr.mxu0 0.0
    %2344 = vmatpush1.msra.mxu0 0.0
    %2345 = vmatprep.subr.mxu0 0.0
    %2346 = vmatpush1.msra.mxu0 0.0
    %2347 = vmatprep.subr.mxu0 0.0
    %2348 = vmatpush1.msra.mxu0 0.0
    %2349 = vmatprep.subr.mxu0 0.0
    %2350 = vmatpush1.msra.mxu0 0.0
    %2351 = vmatprep.subr.mxu0 0.0
    %2352 = vmatpush1.msra.mxu0 0.0
    %2353 = vmatprep.subr.mxu0 0.0
    %2354 = vmatpush1.msra.mxu0 0.0
    %2355 = vmatprep.subr.mxu0 0.0
    %2356 = vmatpush1.msra.mxu0 0.0
    %2357 = vmatprep.subr.mxu0 0.0
    %2358 = vmatpush1.msra.mxu0 0.0
    %2359 = vmatprep.subr.mxu0 0.0
    %2360 = vmatpush1.msra.mxu0 0.0
    %2361 = vmatprep.subr.mxu0 0.0
    %2362 = vmatpush1.msra.mxu0 0.0
    %2363 = vmatprep.subr.mxu0 0.0
    %2364 = vmatpush1.msra.mxu0 0.0
    %2365 = vmatprep.subr.mxu0 0.0
    %2366 = vmatpush1.msra.mxu0 0.0
    %2367 = vmatprep.subr.mxu0 0.0
    %2368 = vmatpush1.msra.mxu0 0.0
    %2369 = vmatprep.subr.mxu0 0.0
    %2370 = vmatpush1.msra.mxu0 0.0
    %2371 = vmatprep.subr.mxu0 0.0
    %2372 = vmatpush1.msra.mxu0 0.0
    %2373 = vmatprep.subr.mxu0 0.0
    %2374 = vmatpush1.msra.mxu0 0.0
    %2375 = vmatprep.subr.mxu0 0.0
    %2376 = vmatpush1.msra.mxu0 0.0
    %2377 = vmatprep.subr.mxu0 0.0
    %2378 = vmatpush1.msra.mxu0 0.0
    %2379 = vmatprep.subr.mxu0 0.0
    %2380 = vmatpush1.msra.mxu0 0.0
    %2381 = vmatprep.subr.mxu0 0.0
    %2382 = vmatpush1.msra.mxu0 0.0
    %2383 = vmatprep.mubr.f32.mxu0 0.0
    %2384 = vmatmul.mubr.f32.gmra.mrb[0].mxu0 %v2314
    %v2385 = vpop.f32.mrb[0].mxu0
    %v2386 = vadd.f32 %v2311, %v2385
    %v2387 = vpop.f32.mrb[0].mxu0
    %2388 = vmatprep.mubr.f32.mxu0 0.0
    %2389 = vmatmul.mubr.f32.gmra.mrb[0].mxu0 %v2317
    %v2390 = vpop.f32.mrb[0].mxu0
    %v2391 = vadd.f32 %v2311, %v2390
    %v2392 = vpop.f32.mrb[0].mxu0
    %2393 = vdwg.mxu0
    %v2394 = vadd.f32 %v2152, %v2386
    %v2395 = vadd.f32 %v2153, %v2391
    %2396 = vst.msk [vmem:[#allocation6] sm:$0xff] %vm50, %v2394
    %2397 = vst.msk [vmem:[#allocation6 + $0x8] sm:$0xff] %vm50, %v2395
    // Predicated region
    $region42: #{tpu_custom_call.1} parent=1 // pred_check
      _
    $region43: #{tpu_custom_call.1} parent=1 // pred_check_branch
      %2399 = sbr.rel (0) target = $region45
    $region44: #{tpu_custom_call.1} parent=1 // pred_region
      %s2401 = ssub.s32 256, 256
      %2402 = vsyncadd [#allocation5], %s2401
      %s2403 = sshll.u32 [#allocation6], 4
      %s2404 = int_to_ptr.vmem [resolvable:$true] %s2403
      %2409 = dma.vmem_to_hbm [thread:$0]  %s2404, 256, %s9, [#allocation5], 128, 128, 8
    $region45: #{tpu_custom_call.1} parent=1 // pred_fallthru
      _
    // Predicated region
    $region46: #{tpu_custom_call.1} parent=1 // pred_check
      _
    $region47: #{tpu_custom_call.1} parent=1 // pred_check_branch
      %2411 = sbr.rel (0) target = $region49
    $region48: #{tpu_custom_call.1} parent=1 // pred_region
      %2412 = dma.done [#allocation5], 256
    $region49: #{tpu_custom_call.1} parent=1 // pred_fallthru
      _
    %2413 = vsyncpa [#allocation4], 1
    %2414 = vsyncpa [#allocation5], 1

</llo_original>
